<compile_context>
chip_gen: v6e
topology: v6e:2x2x1
jax: 0.10.0
libtpu: 0.0.40
codegen_flags: <defaults>
</compile_context>

<pallas_src>
import numpy as np

import jax
import jax.numpy as jnp
from jax import lax
from jax.experimental import pallas as pl
from jax.experimental.pallas import tpu as pltpu


# ---------------------------------------------------------------------------
# Fixed geometry of the instantiated config (16x16 input, see Model below).
# ---------------------------------------------------------------------------
H = W = 16
C_IN = 4
CP = 16                     # channel rows per activation scratch (bf16 sublane tile)
N18 = 18 * 18               # flattened padded 18x18 grid
N10 = 10 * 10               # flattened padded 10x10 grid
G0 = 24                     # lane guard around the 18x18 activations (> max tap shift 19)
G1 = 16                     # lane guard around the 10x10 activations (> max tap shift 11)
A0_LANES = G0 + N18 + G0    # 372
A1_LANES = G1 + N10 + G1    # 132
D18 = tuple(di * 18 + dj for di in (-1, 0, 1) for dj in (-1, 0, 1))
D10 = tuple(di * 10 + dj for di in (-1, 0, 1) for dj in (-1, 0, 1))
C0, C1, C2, C4 = 8, 16, 16, 8
K9 = 9 * CP                 # 144 = packed-tap contraction depth
OUT_LANES = 128             # lane-dense output width (100 grid lanes + pad)


def _silu(v):
    return v * jax.nn.sigmoid(v)


# ---------------------------------------------------------------------------
# The single fused Pallas kernel: all 5 layers for a block of images.
# Layout everywhere: (channels on sublanes, flattened spatial on lanes).
# ---------------------------------------------------------------------------
def _yolo_fused_kernel(x_ref, sel_ref, m18_ref,
                       w0_ref, b0_ref, w1_ref, b1_ref, w2_ref, b2_ref,
                       w4a_ref, w4b_ref, b4_ref,
                       o_ref, a0_ref, a1_ref):
    f32, bf16 = jnp.float32, jnp.bfloat16

    # The lane guard bands of the layer-0 activation scratch must be zero so
    # that layer-1 windows near the border read true zero padding.  The
    # interior (all 16 channel rows) is fully rewritten for every image, so
    # only the two guard bands need refreshing, once per grid step.
    a0_ref[:, pl.ds(0, G0)] = jnp.zeros((CP, G0), bf16)
    a0_ref[:, pl.ds(A0_LANES - G0, G0)] = jnp.zeros((CP, G0), bf16)

    nb = x_ref.shape[0]
    for b in range(nb):                                   # unrolled image loop
        # ----- layer 0: Conv 4->8, k3 s1, on the padded 18x18 grid ----------
        # 9 shifted (16, 324) windows stacked along sublanes -> one K=144 dot.
        im0 = jnp.concatenate(
            [x_ref[b, :, pl.ds(G0 + d, N18)] for d in D18], axis=0)   # (144, 324)
        acc0 = jnp.dot(w0_ref[...], im0, preferred_element_type=f32)  # (16, 324)
        y0 = _silu(acc0 + b0_ref[...]) * m18_ref[...]                 # ring -> 0
        a0_ref[:, pl.ds(G0, N18)] = y0.astype(bf16)       # pad rows are exact 0

        # ----- layer 1: Conv 8->16, k3 s2 ------------------------------------
        # Full-resolution conv on the 18x18 grid ...
        im1 = jnp.concatenate(
            [a0_ref[:, pl.ds(G0 + d, N18)] for d in D18], axis=0)     # (144, 324)
        acc1 = jnp.dot(w1_ref[...], im1, preferred_element_type=f32)  # (16, 324)
        y1f = _silu(acc1 + b1_ref[...])                               # f32, exact
        # ... then exact stride-2 subsample + re-pad to the 10x10 grid via one
        # bf16 0/1 selection matmul whose output IS the full a1 scratch
        # (guards and ring columns of sel are all-zero).
        a1v = jnp.dot(y1f.astype(bf16), sel_ref[...],
                      preferred_element_type=f32)                     # (16, 132)
        a1_ref[...] = a1v.astype(bf16)

        # ----- layer 2: Conv 16->16, k3 s1, on the padded 10x10 grid ---------
        cols2 = [a1_ref[:, pl.ds(G1 + d, N10)] for d in D10]
        im2 = jnp.concatenate(cols2, axis=0)                          # (144, 100)
        acc2 = jnp.dot(w2_ref[...], im2, preferred_element_type=f32)  # (16, 100)
        y2 = _silu(acc2 + b2_ref[...])

        # ----- layer 3 (Concat) fused into layer 4 (Conv 32->8, k1) ----------
        # concat([y2, y1]) along channels == split-K of the 1x1 conv.
        y1c = cols2[4]                        # center tap == a1 interior (bf16)
        pre = (jnp.dot(w4a_ref[...], y2.astype(bf16),
                       preferred_element_type=f32)
               + jnp.dot(w4b_ref[...], y1c, preferred_element_type=f32)
               + b4_ref[...])                                         # (8, 100)
        o_ref[b, :, pl.ds(0, N10)] = _silu(pre)
        o_ref[b, :, pl.ds(N10, OUT_LANES - N10)] = jnp.zeros(
            (C4, OUT_LANES - N10), f32)


# ---------------------------------------------------------------------------
# Host-side constant helpers (packed weights, selection matrix, ring mask).
# ---------------------------------------------------------------------------
def _pack_conv3x3(w_eff, c_in, c_out):
    """(3,3,c_in,c_out) bf16 -> (CP, 9*CP): tap t = 3*(di+1)+(dj+1) packed along
    K in the same order as the kernel's im2col sublane blocks; padded channels
    and padded output rows are zero."""
    w = jnp.reshape(w_eff, (9, c_in, c_out)).astype(jnp.bfloat16)
    wp = jnp.zeros((9, CP, CP), jnp.bfloat16).at[:, :c_in, :c_out].set(w)
    return jnp.transpose(wp, (2, 0, 1)).reshape(CP, K9)


def _pad_bias(shift, c_out):
    return jnp.zeros((CP, 1), jnp.float32).at[:c_out, 0].set(shift)


def _build_selT():
    """(324, 132) 0/1 matrix: a1 lane G1 + i*10 + j (interior i,j in 1..8) takes
    full-res 18x18 position (2i-1, 2j-1); guard + ring lanes are all-zero."""
    sel = np.zeros((N18, A1_LANES), np.float32)
    for i in range(1, 9):
        for j in range(1, 9):
            sel[(2 * i - 1) * 18 + (2 * j - 1), G1 + i * 10 + j] = 1.0
    return jnp.asarray(sel, dtype=jnp.bfloat16)


def _interior_mask18():
    m = np.zeros((18, 18), np.float32)
    m[1:17, 1:17] = 1.0
    return jnp.asarray(m.reshape(1, N18))


def _images_per_step(n):
    """Images folded into one grid step: amortizes per-step overhead while
    keeping the grid >= 2 steps when possible (two TensorCores on v7x)."""
    best = 1
    for b in range(1, 5):
        if n % b == 0 and n // b >= 2:
            best = b
    return best


# ---------------------------------------------------------------------------
# Layers (parameters + pure-JAX reference path) and the Model.
# ---------------------------------------------------------------------------
class ConvLayer:
    """Conv2d(bias=False) + BatchNorm2d (folded) + SiLU, like YOLO `Conv`."""

    def __init__(self, key, c_in, c_out, k, s, f, i):
        self.c_in, self.c_out, self.k, self.s = c_in, c_out, k, s
        self.f, self.i = f, i
        kw, kb = jax.random.split(key)
        self.w = 0.1 * jax.random.normal(kw, (k, k, c_in, c_out), jnp.float32)
        self.scale = 1.0 + 0.01 * jnp.arange(c_out, dtype=jnp.float32)
        self.shift = 0.05 * jax.random.normal(kb, (c_out,), jnp.float32)
        # BN scale folded into the weights; bf16 is the MXU operand dtype.
        self.w_eff = (self.w * self.scale).astype(jnp.bfloat16)

    def ref(self, x_nhwc):
        p = self.k // 2
        y = lax.conv_general_dilated(
            x_nhwc.astype(jnp.bfloat16), self.w_eff,
            window_strides=(self.s, self.s),
            padding=[(p, p), (p, p)],
            dimension_numbers=("NHWC", "HWIO", "NHWC"),
            preferred_element_type=jnp.float32)
        y = y + self.shift
        return y * jax.nn.sigmoid(y)


class ConcatLayer:
    """Channel concat (routing layer)."""

    def __init__(self, f, i):
        self.f, self.i = f, i

    def ref(self, xs):
        return jnp.concatenate(xs, axis=-1)


class Model:
    def __init__(self, key):
        ks = jax.random.split(key, 4)
        self.model = [
            ConvLayer(ks[0], 4,  8,  3, 1, f=-1,      i=0),
            ConvLayer(ks[1], 8,  16, 3, 2, f=-1,      i=1),
            ConvLayer(ks[2], 16, 16, 3, 1, f=-1,      i=2),
            ConcatLayer(                   f=[-1, 1], i=3),   # -> 32 channels
            ConvLayer(ks[3], 32, 8,  1, 1, f=-1,      i=4),
        ]
        self.save = {1}
        self._ops = self._prepare_fused_operands()
        self._forward = jax.jit(self._fused_forward)

    # -- constant operands of the fused kernel --------------------------------
    def _prepare_fused_operands(self):
        l0, l1, l2, _, l4 = self.model
        w4 = l4.w_eff.reshape(l4.c_in, l4.c_out)            # (32, 8) bf16
        return dict(
            selT=_build_selT(),
            m18=_interior_mask18(),
            w0=_pack_conv3x3(l0.w_eff, l0.c_in, l0.c_out),
            b0=_pad_bias(l0.shift, l0.c_out),
            w1=_pack_conv3x3(l1.w_eff, l1.c_in, l1.c_out),
            b1=_pad_bias(l1.shift, l1.c_out),
            w2=_pack_conv3x3(l2.w_eff, l2.c_in, l2.c_out),
            b2=_pad_bias(l2.shift, l2.c_out),
            w4a=jnp.transpose(w4[:C2, :]),                   # (8, 16) bf16
            w4b=jnp.transpose(w4[C2:, :]),                   # (8, 16) bf16
            b4=l4.shift.reshape(l4.c_out, 1),                # (8, 1)  f32
        )

    # -- single fused Pallas forward ------------------------------------------
    def _fused_forward(self, x_nchw):
        ops = self._ops
        n = x_nchw.shape[0]
        nb = _images_per_step(n)

        # NCHW f32 -> (n, 16 ch, 372) bf16: pad channels 4->16, spatial pad 1,
        # flatten the 18x18 grid row-major, add G0-lane guard bands.
        xp = jnp.pad(x_nchw.astype(jnp.float32),
                     ((0, 0), (0, CP - C_IN), (1, 1), (1, 1)))
        xp = xp.reshape(n, CP, N18)
        xp = jnp.pad(xp, ((0, 0), (0, 0), (G0, G0))).astype(jnp.bfloat16)

        operands = (xp, ops["selT"], ops["m18"],
                    ops["w0"], ops["b0"], ops["w1"], ops["b1"],
                    ops["w2"], ops["b2"], ops["w4a"], ops["w4b"], ops["b4"])

        in_specs = [pl.BlockSpec((nb, CP, A0_LANES), lambda i: (i, 0, 0))]
        in_specs += [pl.BlockSpec(a.shape, lambda i, _nd=a.ndim: (0,) * _nd)
                     for a in operands[1:]]

        macs = n * (2 * CP * K9 * N18 + CP * N18 * A1_LANES
                    + CP * K9 * N10 + 2 * C4 * C1 * N10)
        transc = n * (2 * CP * N18 + C2 * N10 + C4 * N10)
        bytes_accessed = (int(xp.size) * 2 + n * C4 * OUT_LANES * 4
                          + sum(int(a.size) * a.dtype.itemsize
                                for a in operands[1:]))

        out = pl.pallas_call(
            _yolo_fused_kernel,
            out_shape=jax.ShapeDtypeStruct((n, C4, OUT_LANES), jnp.float32),
            grid_spec=pltpu.PrefetchScalarGridSpec(
                num_scalar_prefetch=0,
                grid=(n // nb,),
                in_specs=in_specs,
                out_specs=pl.BlockSpec((nb, C4, OUT_LANES), lambda i: (i, 0, 0)),
                scratch_shapes=[pltpu.VMEM((CP, A0_LANES), jnp.bfloat16),
                                pltpu.VMEM((C1, A1_LANES), jnp.bfloat16)]),
            compiler_params=pltpu.CompilerParams(
                dimension_semantics=("parallel",)),
            cost_estimate=pl.CostEstimate(
                flops=2 * macs, transcendentals=int(transc),
                bytes_accessed=int(bytes_accessed)),
        )(*operands)

        # (n, 8, 128) -> keep the 100 grid lanes, take the 8x8 interior -> NCHW
        y = out[:, :, :N10].reshape(n, C4, 10, 10)[:, :, 1:9, 1:9]
        return y

    def forward(self, x_nchw):
        return self._forward(x_nchw)

    # -- pure-JAX reference: the generic forward_once routing loop ------------
    def forward_ref(self, x_nchw):
        x = jnp.transpose(x_nchw, (0, 2, 3, 1)).astype(jnp.float32)
        y = []
        for m in self.model:
            if m.f != -1:
                x = y[m.f] if isinstance(m.f, int) else \
                    [x if j == -1 else y[j] for j in m.f]
            x = m.ref(x)
            y.append(x if m.i in self.save else None)
        return jnp.transpose(x, (0, 3, 1, 2))


if __name__ == "__main__":
    key = jax.random.PRNGKey(0)
    k_model, k_x = jax.random.split(key)

    model = Model(k_model)
    x = jax.random.normal(k_x, (2, 4, 16, 16), jnp.float32)   # NCHW like PyTorch

    out = jax.block_until_ready(model.forward(x))
    ref = jax.block_until_ready(model.forward_ref(x))

    assert out.shape == ref.shape == (2, 8, 8, 8), (out.shape, ref.shape)
    max_err = float(jnp.max(jnp.abs(out - ref)))
    # bf16 MXU operands on both sides -> agreement well inside 1e-2.
    assert jnp.allclose(out, ref, rtol=1e-2, atol=1e-2), max_err

    print("KERNEL_OK")
</pallas_src>

<mosaic_0001>
module attributes {stable_mosaic.version = 11 : i64} {
  func.func @_yolo_fused_kernel(%arg0: i32, %arg1: memref<1x16x372xbf16, #tpu.memory_space<vmem>>, %arg2: memref<324x132xbf16, #tpu.memory_space<vmem>>, %arg3: memref<1x324xf32, #tpu.memory_space<vmem>>, %arg4: memref<16x144xbf16, #tpu.memory_space<vmem>>, %arg5: memref<16x1xf32, #tpu.memory_space<vmem>>, %arg6: memref<16x144xbf16, #tpu.memory_space<vmem>>, %arg7: memref<16x1xf32, #tpu.memory_space<vmem>>, %arg8: memref<16x144xbf16, #tpu.memory_space<vmem>>, %arg9: memref<16x1xf32, #tpu.memory_space<vmem>>, %arg10: memref<8x16xbf16, #tpu.memory_space<vmem>>, %arg11: memref<8x16xbf16, #tpu.memory_space<vmem>>, %arg12: memref<8x1xf32, #tpu.memory_space<vmem>>, %arg13: memref<1x8x128xf32, #tpu.memory_space<vmem>>, %arg14: memref<16x372xbf16, #tpu.memory_space<vmem>>, %arg15: memref<16x132xbf16, #tpu.memory_space<vmem>>) attributes {dimension_semantics = [#tpu.dimension_semantics<parallel>], iteration_bounds = array<i64: 2>, scalar_prefetch = 0 : i64, scratch_operands = 2 : i64, tpu.core_type = #tpu.core_type<tc>, window_params = [{transform_indices = @transform_0, window_bounds = array<i64: 1, 16, 372>}, {pipeline_mode = #tpu.pipeline_mode<synchronous>, transform_indices = @transform_1, window_bounds = array<i64: 324, 132>}, {pipeline_mode = #tpu.pipeline_mode<synchronous>, transform_indices = @transform_2, window_bounds = array<i64: 1, 324>}, {pipeline_mode = #tpu.pipeline_mode<synchronous>, transform_indices = @transform_3, window_bounds = array<i64: 16, 144>}, {pipeline_mode = #tpu.pipeline_mode<synchronous>, transform_indices = @transform_4, window_bounds = array<i64: 16, 1>}, {pipeline_mode = #tpu.pipeline_mode<synchronous>, transform_indices = @transform_5, window_bounds = array<i64: 16, 144>}, {pipeline_mode = #tpu.pipeline_mode<synchronous>, transform_indices = @transform_6, window_bounds = array<i64: 16, 1>}, {pipeline_mode = #tpu.pipeline_mode<synchronous>, transform_indices = @transform_7, window_bounds = array<i64: 16, 144>}, {pipeline_mode = #tpu.pipeline_mode<synchronous>, transform_indices = @transform_8, window_bounds = array<i64: 16, 1>}, {pipeline_mode = #tpu.pipeline_mode<synchronous>, transform_indices = @transform_9, window_bounds = array<i64: 8, 16>}, {pipeline_mode = #tpu.pipeline_mode<synchronous>, transform_indices = @transform_10, window_bounds = array<i64: 8, 16>}, {pipeline_mode = #tpu.pipeline_mode<synchronous>, transform_indices = @transform_11, window_bounds = array<i64: 8, 1>}, {transform_indices = @transform_12, window_bounds = array<i64: 1, 8, 128>}]} {
    %cst = arith.constant 0.000000e+00 : bf16
    %0 = vector.broadcast %cst : bf16 to vector<16x24xbf16>
    %c0 = arith.constant 0 : index
    %c0_0 = arith.constant 0 : index
    %1 = vector.load %arg14[%c0, %c0_0] : memref<16x372xbf16, #tpu.memory_space<vmem>>, vector<16x24xbf16>
    tpu.vector_store %arg14[%c0, %c0_0], %0 {strides = array<i32>} : memref<16x372xbf16, #tpu.memory_space<vmem>>, vector<16x24xbf16>,
    %cst_1 = arith.constant 0.000000e+00 : bf16
    %2 = vector.broadcast %cst_1 : bf16 to vector<16x24xbf16>
    %c0_2 = arith.constant 0 : index
    %c348 = arith.constant 348 : index
    %3 = vector.load %arg14[%c0_2, %c348] : memref<16x372xbf16, #tpu.memory_space<vmem>>, vector<16x24xbf16>
    tpu.vector_store %arg14[%c0_2, %c348], %2 {strides = array<i32>} : memref<16x372xbf16, #tpu.memory_space<vmem>>, vector<16x24xbf16>,
    %c0_3 = arith.constant 0 : index
    %c0_4 = arith.constant 0 : index
    %c5 = arith.constant 5 : index
    %4 = vector.load %arg1[%c0_3, %c0_4, %c5] : memref<1x16x372xbf16, #tpu.memory_space<vmem>>, vector<1x16x324xbf16>
    %5 = vector.shape_cast %4 : vector<1x16x324xbf16> to vector<16x324xbf16>
    %c0_5 = arith.constant 0 : index
    %c0_6 = arith.constant 0 : index
    %c6 = arith.constant 6 : index
    %6 = vector.load %arg1[%c0_5, %c0_6, %c6] : memref<1x16x372xbf16, #tpu.memory_space<vmem>>, vector<1x16x324xbf16>
    %7 = vector.shape_cast %6 : vector<1x16x324xbf16> to vector<16x324xbf16>
    %c0_7 = arith.constant 0 : index
    %c0_8 = arith.constant 0 : index
    %c7 = arith.constant 7 : index
    %8 = vector.load %arg1[%c0_7, %c0_8, %c7] : memref<1x16x372xbf16, #tpu.memory_space<vmem>>, vector<1x16x324xbf16>
    %9 = vector.shape_cast %8 : vector<1x16x324xbf16> to vector<16x324xbf16>
    %c0_9 = arith.constant 0 : index
    %c0_10 = arith.constant 0 : index
    %c23 = arith.constant 23 : index
    %10 = vector.load %arg1[%c0_9, %c0_10, %c23] : memref<1x16x372xbf16, #tpu.memory_space<vmem>>, vector<1x16x324xbf16>
    %11 = vector.shape_cast %10 : vector<1x16x324xbf16> to vector<16x324xbf16>
    %c0_11 = arith.constant 0 : index
    %c0_12 = arith.constant 0 : index
    %c24 = arith.constant 24 : index
    %12 = vector.load %arg1[%c0_11, %c0_12, %c24] : memref<1x16x372xbf16, #tpu.memory_space<vmem>>, vector<1x16x324xbf16>
    %13 = vector.shape_cast %12 : vector<1x16x324xbf16> to vector<16x324xbf16>
    %c0_13 = arith.constant 0 : index
    %c0_14 = arith.constant 0 : index
    %c25 = arith.constant 25 : index
    %14 = vector.load %arg1[%c0_13, %c0_14, %c25] : memref<1x16x372xbf16, #tpu.memory_space<vmem>>, vector<1x16x324xbf16>
    %15 = vector.shape_cast %14 : vector<1x16x324xbf16> to vector<16x324xbf16>
    %c0_15 = arith.constant 0 : index
    %c0_16 = arith.constant 0 : index
    %c41 = arith.constant 41 : index
    %16 = vector.load %arg1[%c0_15, %c0_16, %c41] : memref<1x16x372xbf16, #tpu.memory_space<vmem>>, vector<1x16x324xbf16>
    %17 = vector.shape_cast %16 : vector<1x16x324xbf16> to vector<16x324xbf16>
    %c0_17 = arith.constant 0 : index
    %c0_18 = arith.constant 0 : index
    %c42 = arith.constant 42 : index
    %18 = vector.load %arg1[%c0_17, %c0_18, %c42] : memref<1x16x372xbf16, #tpu.memory_space<vmem>>, vector<1x16x324xbf16>
    %19 = vector.shape_cast %18 : vector<1x16x324xbf16> to vector<16x324xbf16>
    %c0_19 = arith.constant 0 : index
    %c0_20 = arith.constant 0 : index
    %c43 = arith.constant 43 : index
    %20 = vector.load %arg1[%c0_19, %c0_20, %c43] : memref<1x16x372xbf16, #tpu.memory_space<vmem>>, vector<1x16x324xbf16>
    %21 = vector.shape_cast %20 : vector<1x16x324xbf16> to vector<16x324xbf16>
    %22 = tpu.concatenate %5, %7, %9, %11, %13, %15, %17, %19, %21 in 0 : vector<16x324xbf16>, vector<16x324xbf16>, vector<16x324xbf16>, vector<16x324xbf16>, vector<16x324xbf16>, vector<16x324xbf16>, vector<16x324xbf16>, vector<16x324xbf16>, vector<16x324xbf16> -> vector<144x324xbf16>
    %c0_21 = arith.constant 0 : index
    %c0_22 = arith.constant 0 : index
    %23 = vector.load %arg4[%c0_21, %c0_22] : memref<16x144xbf16, #tpu.memory_space<vmem>>, vector<16x144xbf16>
    %cst_23 = arith.constant dense<0.000000e+00> : vector<16x324xf32>
    %24 = tpu.matmul %23, %22, %cst_23 {dimension_numbers = #tpu.dot_dimension_numbers<[1], [0], [0], [1], [0, 0, 1, 1], [], []>} : vector<16x144xbf16>, vector<144x324xbf16>, vector<16x324xf32> -> vector<16x324xf32>
    %c0_24 = arith.constant 0 : index
    %c0_25 = arith.constant 0 : index
    %25 = vector.load %arg5[%c0_24, %c0_25] : memref<16x1xf32, #tpu.memory_space<vmem>>, vector<16x1xf32>
    %26 = vector.broadcast %25 : vector<16x1xf32> to vector<16x324xf32>
    %27 = arith.addf %24, %26 : vector<16x324xf32>
    %28 = arith.negf %27 : vector<16x324xf32>
    %29 = math.exp %28 : vector<16x324xf32>
    %cst_26 = arith.constant 1.000000e+00 : f32
    %30 = vector.broadcast %cst_26 : f32 to vector<16x324xf32>
    %31 = arith.addf %30, %29 : vector<16x324xf32>
    %32 = arith.divf %30, %31 : vector<16x324xf32>
    %33 = arith.mulf %27, %32 : vector<16x324xf32>
    %c0_27 = arith.constant 0 : index
    %c0_28 = arith.constant 0 : index
    %34 = vector.load %arg3[%c0_27, %c0_28] : memref<1x324xf32, #tpu.memory_space<vmem>>, vector<1x324xf32>
    %35 = vector.broadcast %34 : vector<1x324xf32> to vector<16x324xf32>
    %36 = arith.mulf %33, %35 : vector<16x324xf32>
    %37 = arith.truncf %36 : vector<16x324xf32> to vector<16x324xbf16>
    %c0_29 = arith.constant 0 : index
    %c24_30 = arith.constant 24 : index
    %38 = vector.load %arg14[%c0_29, %c24_30] : memref<16x372xbf16, #tpu.memory_space<vmem>>, vector<16x324xbf16>
    tpu.vector_store %arg14[%c0_29, %c24_30], %37 {strides = array<i32>} : memref<16x372xbf16, #tpu.memory_space<vmem>>, vector<16x324xbf16>,
    %c0_31 = arith.constant 0 : index
    %c5_32 = arith.constant 5 : index
    %39 = vector.load %arg14[%c0_31, %c5_32] : memref<16x372xbf16, #tpu.memory_space<vmem>>, vector<16x324xbf16>
    %c0_33 = arith.constant 0 : index
    %c6_34 = arith.constant 6 : index
    %40 = vector.load %arg14[%c0_33, %c6_34] : memref<16x372xbf16, #tpu.memory_space<vmem>>, vector<16x324xbf16>
    %c0_35 = arith.constant 0 : index
    %c7_36 = arith.constant 7 : index
    %41 = vector.load %arg14[%c0_35, %c7_36] : memref<16x372xbf16, #tpu.memory_space<vmem>>, vector<16x324xbf16>
    %c0_37 = arith.constant 0 : index
    %c23_38 = arith.constant 23 : index
    %42 = vector.load %arg14[%c0_37, %c23_38] : memref<16x372xbf16, #tpu.memory_space<vmem>>, vector<16x324xbf16>
    %c0_39 = arith.constant 0 : index
    %c24_40 = arith.constant 24 : index
    %43 = vector.load %arg14[%c0_39, %c24_40] : memref<16x372xbf16, #tpu.memory_space<vmem>>, vector<16x324xbf16>
    %c0_41 = arith.constant 0 : index
    %c25_42 = arith.constant 25 : index
    %44 = vector.load %arg14[%c0_41, %c25_42] : memref<16x372xbf16, #tpu.memory_space<vmem>>, vector<16x324xbf16>
    %c0_43 = arith.constant 0 : index
    %c41_44 = arith.constant 41 : index
    %45 = vector.load %arg14[%c0_43, %c41_44] : memref<16x372xbf16, #tpu.memory_space<vmem>>, vector<16x324xbf16>
    %c0_45 = arith.constant 0 : index
    %c42_46 = arith.constant 42 : index
    %46 = vector.load %arg14[%c0_45, %c42_46] : memref<16x372xbf16, #tpu.memory_space<vmem>>, vector<16x324xbf16>
    %c0_47 = arith.constant 0 : index
    %c43_48 = arith.constant 43 : index
    %47 = vector.load %arg14[%c0_47, %c43_48] : memref<16x372xbf16, #tpu.memory_space<vmem>>, vector<16x324xbf16>
    %48 = tpu.concatenate %39, %40, %41, %42, %43, %44, %45, %46, %47 in 0 : vector<16x324xbf16>, vector<16x324xbf16>, vector<16x324xbf16>, vector<16x324xbf16>, vector<16x324xbf16>, vector<16x324xbf16>, vector<16x324xbf16>, vector<16x324xbf16>, vector<16x324xbf16> -> vector<144x324xbf16>
    %c0_49 = arith.constant 0 : index
    %c0_50 = arith.constant 0 : index
    %49 = vector.load %arg6[%c0_49, %c0_50] : memref<16x144xbf16, #tpu.memory_space<vmem>>, vector<16x144xbf16>
    %cst_51 = arith.constant dense<0.000000e+00> : vector<16x324xf32>
    %50 = tpu.matmul %49, %48, %cst_51 {dimension_numbers = #tpu.dot_dimension_numbers<[1], [0], [0], [1], [0, 0, 1, 1], [], []>} : vector<16x144xbf16>, vector<144x324xbf16>, vector<16x324xf32> -> vector<16x324xf32>
    %c0_52 = arith.constant 0 : index
    %c0_53 = arith.constant 0 : index
    %51 = vector.load %arg7[%c0_52, %c0_53] : memref<16x1xf32, #tpu.memory_space<vmem>>, vector<16x1xf32>
    %52 = vector.broadcast %51 : vector<16x1xf32> to vector<16x324xf32>
    %53 = arith.addf %50, %52 : vector<16x324xf32>
    %54 = arith.negf %53 : vector<16x324xf32>
    %55 = math.exp %54 : vector<16x324xf32>
    %cst_54 = arith.constant 1.000000e+00 : f32
    %56 = vector.broadcast %cst_54 : f32 to vector<16x324xf32>
    %57 = arith.addf %56, %55 : vector<16x324xf32>
    %58 = arith.divf %56, %57 : vector<16x324xf32>
    %59 = arith.mulf %53, %58 : vector<16x324xf32>
    %60 = arith.truncf %59 : vector<16x324xf32> to vector<16x324xbf16>
    %c0_55 = arith.constant 0 : index
    %c0_56 = arith.constant 0 : index
    %61 = vector.load %arg2[%c0_55, %c0_56] : memref<324x132xbf16, #tpu.memory_space<vmem>>, vector<324x132xbf16>
    %cst_57 = arith.constant dense<0.000000e+00> : vector<16x132xf32>
    %62 = tpu.matmul %60, %61, %cst_57 {dimension_numbers = #tpu.dot_dimension_numbers<[1], [0], [0], [1], [0, 0, 1, 1], [], []>} : vector<16x324xbf16>, vector<324x132xbf16>, vector<16x132xf32> -> vector<16x132xf32>
    %63 = arith.truncf %62 : vector<16x132xf32> to vector<16x132xbf16>
    %c0_58 = arith.constant 0 : index
    %c0_59 = arith.constant 0 : index
    %64 = vector.load %arg15[%c0_58, %c0_59] : memref<16x132xbf16, #tpu.memory_space<vmem>>, vector<16x132xbf16>
    tpu.vector_store %arg15[%c0_58, %c0_59], %63 {strides = array<i32>} : memref<16x132xbf16, #tpu.memory_space<vmem>>, vector<16x132xbf16>,
    %c0_60 = arith.constant 0 : index
    %c5_61 = arith.constant 5 : index
    %65 = vector.load %arg15[%c0_60, %c5_61] : memref<16x132xbf16, #tpu.memory_space<vmem>>, vector<16x100xbf16>
    %c0_62 = arith.constant 0 : index
    %c6_63 = arith.constant 6 : index
    %66 = vector.load %arg15[%c0_62, %c6_63] : memref<16x132xbf16, #tpu.memory_space<vmem>>, vector<16x100xbf16>
    %c0_64 = arith.constant 0 : index
    %c7_65 = arith.constant 7 : index
    %67 = vector.load %arg15[%c0_64, %c7_65] : memref<16x132xbf16, #tpu.memory_space<vmem>>, vector<16x100xbf16>
    %c0_66 = arith.constant 0 : index
    %c15 = arith.constant 15 : index
    %68 = vector.load %arg15[%c0_66, %c15] : memref<16x132xbf16, #tpu.memory_space<vmem>>, vector<16x100xbf16>
    %c0_67 = arith.constant 0 : index
    %c16 = arith.constant 16 : index
    %69 = vector.load %arg15[%c0_67, %c16] : memref<16x132xbf16, #tpu.memory_space<vmem>>, vector<16x100xbf16>
    %c0_68 = arith.constant 0 : index
    %c17 = arith.constant 17 : index
    %70 = vector.load %arg15[%c0_68, %c17] : memref<16x132xbf16, #tpu.memory_space<vmem>>, vector<16x100xbf16>
    %c0_69 = arith.constant 0 : index
    %c25_70 = arith.constant 25 : index
    %71 = vector.load %arg15[%c0_69, %c25_70] : memref<16x132xbf16, #tpu.memory_space<vmem>>, vector<16x100xbf16>
    %c0_71 = arith.constant 0 : index
    %c26 = arith.constant 26 : index
    %72 = vector.load %arg15[%c0_71, %c26] : memref<16x132xbf16, #tpu.memory_space<vmem>>, vector<16x100xbf16>
    %c0_72 = arith.constant 0 : index
    %c27 = arith.constant 27 : index
    %73 = vector.load %arg15[%c0_72, %c27] : memref<16x132xbf16, #tpu.memory_space<vmem>>, vector<16x100xbf16>
    %74 = tpu.concatenate %65, %66, %67, %68, %69, %70, %71, %72, %73 in 0 : vector<16x100xbf16>, vector<16x100xbf16>, vector<16x100xbf16>, vector<16x100xbf16>, vector<16x100xbf16>, vector<16x100xbf16>, vector<16x100xbf16>, vector<16x100xbf16>, vector<16x100xbf16> -> vector<144x100xbf16>
    %c0_73 = arith.constant 0 : index
    %c0_74 = arith.constant 0 : index
    %75 = vector.load %arg8[%c0_73, %c0_74] : memref<16x144xbf16, #tpu.memory_space<vmem>>, vector<16x144xbf16>
    %cst_75 = arith.constant dense<0.000000e+00> : vector<16x100xf32>
    %76 = tpu.matmul %75, %74, %cst_75 {dimension_numbers = #tpu.dot_dimension_numbers<[1], [0], [0], [1], [0, 0, 1, 1], [], []>} : vector<16x144xbf16>, vector<144x100xbf16>, vector<16x100xf32> -> vector<16x100xf32>
    %c0_76 = arith.constant 0 : index
    %c0_77 = arith.constant 0 : index
    %77 = vector.load %arg9[%c0_76, %c0_77] : memref<16x1xf32, #tpu.memory_space<vmem>>, vector<16x1xf32>
    %78 = vector.broadcast %77 : vector<16x1xf32> to vector<16x100xf32>
    %79 = arith.addf %76, %78 : vector<16x100xf32>
    %80 = arith.negf %79 : vector<16x100xf32>
    %81 = math.exp %80 : vector<16x100xf32>
    %cst_78 = arith.constant 1.000000e+00 : f32
    %82 = vector.broadcast %cst_78 : f32 to vector<16x100xf32>
    %83 = arith.addf %82, %81 : vector<16x100xf32>
    %84 = arith.divf %82, %83 : vector<16x100xf32>
    %85 = arith.mulf %79, %84 : vector<16x100xf32>
    %c0_79 = arith.constant 0 : index
    %c0_80 = arith.constant 0 : index
    %86 = vector.load %arg10[%c0_79, %c0_80] : memref<8x16xbf16, #tpu.memory_space<vmem>>, vector<8x16xbf16>
    %87 = arith.truncf %85 : vector<16x100xf32> to vector<16x100xbf16>
    %cst_81 = arith.constant dense<0.000000e+00> : vector<8x100xf32>
    %88 = tpu.matmul %86, %87, %cst_81 {dimension_numbers = #tpu.dot_dimension_numbers<[1], [0], [0], [1], [0, 0, 1, 1], [], []>} : vector<8x16xbf16>, vector<16x100xbf16>, vector<8x100xf32> -> vector<8x100xf32>
    %c0_82 = arith.constant 0 : index
    %c0_83 = arith.constant 0 : index
    %89 = vector.load %arg11[%c0_82, %c0_83] : memref<8x16xbf16, #tpu.memory_space<vmem>>, vector<8x16xbf16>
    %cst_84 = arith.constant dense<0.000000e+00> : vector<8x100xf32>
    %90 = tpu.matmul %89, %69, %cst_84 {dimension_numbers = #tpu.dot_dimension_numbers<[1], [0], [0], [1], [0, 0, 1, 1], [], []>} : vector<8x16xbf16>, vector<16x100xbf16>, vector<8x100xf32> -> vector<8x100xf32>
    %91 = arith.addf %88, %90 : vector<8x100xf32>
    %c0_85 = arith.constant 0 : index
    %c0_86 = arith.constant 0 : index
    %92 = vector.load %arg12[%c0_85, %c0_86] : memref<8x1xf32, #tpu.memory_space<vmem>>, vector<8x1xf32>
    %93 = vector.broadcast %92 : vector<8x1xf32> to vector<8x100xf32>
    %94 = arith.addf %91, %93 : vector<8x100xf32>
    %95 = arith.negf %94 : vector<8x100xf32>
    %96 = math.exp %95 : vector<8x100xf32>
    %cst_87 = arith.constant 1.000000e+00 : f32
    %97 = vector.broadcast %cst_87 : f32 to vector<8x100xf32>
    %98 = arith.addf %97, %96 : vector<8x100xf32>
    %99 = arith.divf %97, %98 : vector<8x100xf32>
    %100 = arith.mulf %94, %99 : vector<8x100xf32>
    %c0_88 = arith.constant 0 : index
    %c0_89 = arith.constant 0 : index
    %c0_90 = arith.constant 0 : index
    %101 = vector.load %arg13[%c0_88, %c0_89, %c0_90] : memref<1x8x128xf32, #tpu.memory_space<vmem>>, vector<1x8x100xf32>
    %102 = vector.shape_cast %101 : vector<1x8x100xf32> to vector<8x100xf32>
    %103 = vector.shape_cast %100 : vector<8x100xf32> to vector<1x8x100xf32>
    tpu.vector_store %arg13[%c0_88, %c0_89, %c0_90], %103 {strides = array<i32>} : memref<1x8x128xf32, #tpu.memory_space<vmem>>, vector<1x8x100xf32>,
    %cst_91 = arith.constant 0.000000e+00 : f32
    %104 = vector.broadcast %cst_91 : f32 to vector<8x28xf32>
    %c0_92 = arith.constant 0 : index
    %c0_93 = arith.constant 0 : index
    %c100 = arith.constant 100 : index
    %105 = vector.load %arg13[%c0_92, %c0_93, %c100] : memref<1x8x128xf32, #tpu.memory_space<vmem>>, vector<1x8x28xf32>
    %106 = vector.shape_cast %105 : vector<1x8x28xf32> to vector<8x28xf32>
    %107 = vector.shape_cast %104 : vector<8x28xf32> to vector<1x8x28xf32>
    tpu.vector_store %arg13[%c0_92, %c0_93, %c100], %107 {strides = array<i32>} : memref<1x8x128xf32, #tpu.memory_space<vmem>>, vector<1x8x28xf32>,
    return
  }
  func.func @transform_0(%arg0: i32) -> (i32, i32, i32) {
    %c0_i32 = arith.constant 0 : i32
    %c0_i32_0 = arith.constant 0 : i32
    %c0_i32_1 = arith.constant 0 : i32
    return %arg0, %c0_i32, %c0_i32_0 : i32, i32, i32
  }
  func.func @transform_1(%arg0: i32) -> (i32, i32) {
    %c0_i32 = arith.constant 0 : i32
    %c0_i32_0 = arith.constant 0 : i32
    %c0_i32_1 = arith.constant 0 : i32
    return %c0_i32, %c0_i32_0 : i32, i32
  }
  func.func @transform_2(%arg0: i32) -> (i32, i32) {
    %c0_i32 = arith.constant 0 : i32
    %c0_i32_0 = arith.constant 0 : i32
    %c0_i32_1 = arith.constant 0 : i32
    return %c0_i32, %c0_i32_0 : i32, i32
  }
  func.func @transform_3(%arg0: i32) -> (i32, i32) {
    %c0_i32 = arith.constant 0 : i32
    %c0_i32_0 = arith.constant 0 : i32
    %c0_i32_1 = arith.constant 0 : i32
    return %c0_i32, %c0_i32_0 : i32, i32
  }
  func.func @transform_4(%arg0: i32) -> (i32, i32) {
    %c0_i32 = arith.constant 0 : i32
    %c0_i32_0 = arith.constant 0 : i32
    %c0_i32_1 = arith.constant 0 : i32
    return %c0_i32, %c0_i32_0 : i32, i32
  }
  func.func @transform_5(%arg0: i32) -> (i32, i32) {
    %c0_i32 = arith.constant 0 : i32
    %c0_i32_0 = arith.constant 0 : i32
    %c0_i32_1 = arith.constant 0 : i32
    return %c0_i32, %c0_i32_0 : i32, i32
  }
  func.func @transform_6(%arg0: i32) -> (i32, i32) {
    %c0_i32 = arith.constant 0 : i32
    %c0_i32_0 = arith.constant 0 : i32
    %c0_i32_1 = arith.constant 0 : i32
    return %c0_i32, %c0_i32_0 : i32, i32
  }
  func.func @transform_7(%arg0: i32) -> (i32, i32) {
    %c0_i32 = arith.constant 0 : i32
    %c0_i32_0 = arith.constant 0 : i32
    %c0_i32_1 = arith.constant 0 : i32
    return %c0_i32, %c0_i32_0 : i32, i32
  }
  func.func @transform_8(%arg0: i32) -> (i32, i32) {
    %c0_i32 = arith.constant 0 : i32
    %c0_i32_0 = arith.constant 0 : i32
    %c0_i32_1 = arith.constant 0 : i32
    return %c0_i32, %c0_i32_0 : i32, i32
  }
  func.func @transform_9(%arg0: i32) -> (i32, i32) {
    %c0_i32 = arith.constant 0 : i32
    %c0_i32_0 = arith.constant 0 : i32
    %c0_i32_1 = arith.constant 0 : i32
    return %c0_i32, %c0_i32_0 : i32, i32
  }
  func.func @transform_10(%arg0: i32) -> (i32, i32) {
    %c0_i32 = arith.constant 0 : i32
    %c0_i32_0 = arith.constant 0 : i32
    %c0_i32_1 = arith.constant 0 : i32
    return %c0_i32, %c0_i32_0 : i32, i32
  }
  func.func @transform_11(%arg0: i32) -> (i32, i32) {
    %c0_i32 = arith.constant 0 : i32
    %c0_i32_0 = arith.constant 0 : i32
    %c0_i32_1 = arith.constant 0 : i32
    return %c0_i32, %c0_i32_0 : i32, i32
  }
  func.func @transform_12(%arg0: i32) -> (i32, i32, i32) {
    %c0_i32 = arith.constant 0 : i32
    %c0_i32_0 = arith.constant 0 : i32
    %c0_i32_1 = arith.constant 0 : i32
    return %arg0, %c0_i32, %c0_i32_0 : i32, i32, i32
  }
}

</mosaic_0001>

<llo_original>
// kernel: _fused_forward.1
$region0: #{_fused_forward.1}
  #allocation0 [shape = 'u32[]', space=smem, size = 0x4, offset = 0x4, fixed_abs, tag = 'smem constant byte address 0x4 - core index']
  #allocation1 [shape = 'u32[144,128]{1,0:T(1,128)}', space=vmem, size = 0x12000, scoped, tag = 'internal scratch']
  #allocation2 [shape = 'bf16[16,372]{1,0:T(8,128)(2,1)}', space=vmem, size = 0x3000, scoped, tag = 'scratch operand']
  #allocation3 [shape = 'bf16[16,132]{1,0:T(8,128)(2,1)}', space=vmem, size = 0x2000, scoped, tag = 'scratch operand']
  %s0 = inlined_call_operand.vmem [shape: bf16[2,16,372], index: 0, kind: input, shape index: {}]
  %s1 = inlined_call_operand.vmem [shape: bf16[324,132], index: 1, kind: input, shape index: {}]
  %s2 = inlined_call_operand.vmem [shape: f32[1,324], index: 2, kind: input, shape index: {}]
  %s3 = inlined_call_operand.vmem [shape: bf16[16,144], index: 3, kind: input, shape index: {}]
  %s4 = inlined_call_operand.vmem [shape: f32[16,1], index: 4, kind: input, shape index: {}]
  %s5 = inlined_call_operand.vmem [shape: bf16[16,144], index: 5, kind: input, shape index: {}]
  %s6 = inlined_call_operand.vmem [shape: f32[16,1], index: 6, kind: input, shape index: {}]
  %s7 = inlined_call_operand.vmem [shape: bf16[16,144], index: 7, kind: input, shape index: {}]
  %s8 = inlined_call_operand.vmem [shape: f32[16,1], index: 8, kind: input, shape index: {}]
  %s9 = inlined_call_operand.vmem [shape: bf16[8,16], index: 9, kind: input, shape index: {}]
  %s10 = inlined_call_operand.vmem [shape: bf16[8,16], index: 10, kind: input, shape index: {}]
  %s11 = inlined_call_operand.vmem [shape: f32[8,1], index: 11, kind: input, shape index: {}]
  %s12 = inlined_call_operand.vmem [shape: f32[2,8,128], index: 12, kind: output, shape index: {}]
  %s13 = sld [smem:[#allocation0]]
  $region81: #{_fused_forward.1} parent=0
    _
  %s15 = ssub.s32 1, %s13
  %s16 = scalar_select 0, %s15, %s13
  loop: start=0, step=1, limit=4
  $region2: #{_fused_forward.1} parent=0 // loop_pre_header
    _
  $region3: #{_fused_forward.1} parent=0 // loop_header
    %s18 = sphi 0, %s22
    %p19 = scmp.ge.s32.totalorder %s18, 4
    %s28 = sphi 0, %s30
    %s31 = sphi 0, %s28
    %s32 = sphi 0, %s31
    %s48 = sphi 0, %s32
    %s52 = sphi 0, %s52
    %s54 = sphi 0, %s52
    %s55 = sphi 0, %s54
    %s69 = sphi 0, %s55
    %s73 = sphi 0, %s73
    %s75 = sphi 0, %s73
    %s76 = sphi 0, %s75
    %s90 = sphi 0, %s76
    %s94 = sphi 0, %s94
    %s96 = sphi 0, %s94
    %s97 = sphi 0, %s96
    %s111 = sphi 0, %s97
    %s115 = sphi 0, %s115
    %s117 = sphi 0, %s115
    %s118 = sphi 0, %s117
    %s132 = sphi 0, %s118
    %s136 = sphi 0, %s136
    %s138 = sphi 0, %s136
    %s139 = sphi 0, %s138
    %s153 = sphi 0, %s139
    %s157 = sphi 0, %s157
    %s159 = sphi 0, %s157
    %s160 = sphi 0, %s159
    %s174 = sphi 0, %s160
    %s178 = sphi 0, %s178
    %s180 = sphi 0, %s178
    %s181 = sphi 0, %s180
    %s195 = sphi 0, %s181
    %s199 = sphi 0, %s199
    %s201 = sphi 0, %s199
    %s202 = sphi 0, %s201
    %s216 = sphi 0, %s202
    %s220 = sphi 0, %s220
    %s222 = sphi 0, %s220
    %s223 = sphi 0, %s222
    %s237 = sphi 0, %s223
    %s241 = sphi 0, %s241
    %s243 = sphi 0, %s241
    %s244 = sphi 0, %s243
    %s258 = sphi 0, %s244
    %s262 = sphi 0, %s262
    %s264 = sphi 0, %s262
    %s265 = sphi 0, %s264
    %s279 = sphi 0, %s265
    %s285 = sphi 0, %s287
    %s288 = sphi 0, %s285
    %s289 = sphi 0, %s288
    %s305 = sphi 0, %s289
  $region4: #{_fused_forward.1} parent=0 // loop_header_branch
    %21 = sbr.rel (%p19) target = $region8
  $region5: #{_fused_forward.1} parent=0 // loop_body
    %s23 = ssub.s32 %s18, 1
    %s24 = ssub.s32 %s18, 2
    %s25 = sadd.s32 %s18, 1
    %s26 = ssub.s32 %s18, %s25
    %p27 = scmp.eq.s32.totalorder %s26, 0
    %s29 = sadd.s32 %s28, 1
    %s30 = scalar_select %p27, %s28, %s29
    %p33 = pneg %p27
    %p34 = scmp.eq.s32.totalorder %s18, 1
    %p35 = por %p33, %p34
    %p36 = scmp.ne.s32.totalorder %s28, %s31
    %p37 = scmp.eq.s32.totalorder %s18, 0
    %p38 = por %p36, %p37
    %p39 = scmp.ne.s32.totalorder %s28, %s31
    %p40 = scmp.eq.s32.totalorder %s23, 1
    %p41 = por %p39, %p40
    %p42 = scmp.ne.s32.totalorder %s31, %s32
    %p43 = scmp.eq.s32.totalorder %s23, 0
    %p44 = por %p42, %p43
    %p45 = scmp.ne.s32.totalorder %s31, %s32
    %p46 = scmp.eq.s32.totalorder %s24, 1
    %p47 = por %p45, %p46
    %p49 = scmp.ne.s32.totalorder %s32, %s48
    %p50 = scmp.eq.s32.totalorder %s24, 0
    %p51 = por %p49, %p50
    %s53 = sadd.s32 %s52, 1
    %p56 = scmp.eq.s32.totalorder %s18, 1
    %p57 = scmp.ne.s32.totalorder %s52, %s54
    %p58 = scmp.eq.s32.totalorder %s18, 0
    %p59 = por %p57, %p58
    %p60 = scmp.ne.s32.totalorder %s52, %s54
    %p61 = scmp.eq.s32.totalorder %s23, 1
    %p62 = por %p60, %p61
    %p63 = scmp.ne.s32.totalorder %s54, %s55
    %p64 = scmp.eq.s32.totalorder %s23, 0
    %p65 = por %p63, %p64
    %p66 = scmp.ne.s32.totalorder %s54, %s55
    %p67 = scmp.eq.s32.totalorder %s24, 1
    %p68 = por %p66, %p67
    %p70 = scmp.ne.s32.totalorder %s55, %s69
    %p71 = scmp.eq.s32.totalorder %s24, 0
    %p72 = por %p70, %p71
    %s74 = sadd.s32 %s73, 1
    %p77 = scmp.eq.s32.totalorder %s18, 1
    %p78 = scmp.ne.s32.totalorder %s73, %s75
    %p79 = scmp.eq.s32.totalorder %s18, 0
    %p80 = por %p78, %p79
    %p81 = scmp.ne.s32.totalorder %s73, %s75
    %p82 = scmp.eq.s32.totalorder %s23, 1
    %p83 = por %p81, %p82
    %p84 = scmp.ne.s32.totalorder %s75, %s76
    %p85 = scmp.eq.s32.totalorder %s23, 0
    %p86 = por %p84, %p85
    %p87 = scmp.ne.s32.totalorder %s75, %s76
    %p88 = scmp.eq.s32.totalorder %s24, 1
    %p89 = por %p87, %p88
    %p91 = scmp.ne.s32.totalorder %s76, %s90
    %p92 = scmp.eq.s32.totalorder %s24, 0
    %p93 = por %p91, %p92
    %s95 = sadd.s32 %s94, 1
    %p98 = scmp.eq.s32.totalorder %s18, 1
    %p99 = scmp.ne.s32.totalorder %s94, %s96
    %p100 = scmp.eq.s32.totalorder %s18, 0
    %p101 = por %p99, %p100
    %p102 = scmp.ne.s32.totalorder %s94, %s96
    %p103 = scmp.eq.s32.totalorder %s23, 1
    %p104 = por %p102, %p103
    %p105 = scmp.ne.s32.totalorder %s96, %s97
    %p106 = scmp.eq.s32.totalorder %s23, 0
    %p107 = por %p105, %p106
    %p108 = scmp.ne.s32.totalorder %s96, %s97
    %p109 = scmp.eq.s32.totalorder %s24, 1
    %p110 = por %p108, %p109
    %p112 = scmp.ne.s32.totalorder %s97, %s111
    %p113 = scmp.eq.s32.totalorder %s24, 0
    %p114 = por %p112, %p113
    %s116 = sadd.s32 %s115, 1
    %p119 = scmp.eq.s32.totalorder %s18, 1
    %p120 = scmp.ne.s32.totalorder %s115, %s117
    %p121 = scmp.eq.s32.totalorder %s18, 0
    %p122 = por %p120, %p121
    %p123 = scmp.ne.s32.totalorder %s115, %s117
    %p124 = scmp.eq.s32.totalorder %s23, 1
    %p125 = por %p123, %p124
    %p126 = scmp.ne.s32.totalorder %s117, %s118
    %p127 = scmp.eq.s32.totalorder %s23, 0
    %p128 = por %p126, %p127
    %p129 = scmp.ne.s32.totalorder %s117, %s118
    %p130 = scmp.eq.s32.totalorder %s24, 1
    %p131 = por %p129, %p130
    %p133 = scmp.ne.s32.totalorder %s118, %s132
    %p134 = scmp.eq.s32.totalorder %s24, 0
    %p135 = por %p133, %p134
    %s137 = sadd.s32 %s136, 1
    %p140 = scmp.eq.s32.totalorder %s18, 1
    %p141 = scmp.ne.s32.totalorder %s136, %s138
    %p142 = scmp.eq.s32.totalorder %s18, 0
    %p143 = por %p141, %p142
    %p144 = scmp.ne.s32.totalorder %s136, %s138
    %p145 = scmp.eq.s32.totalorder %s23, 1
    %p146 = por %p144, %p145
    %p147 = scmp.ne.s32.totalorder %s138, %s139
    %p148 = scmp.eq.s32.totalorder %s23, 0
    %p149 = por %p147, %p148
    %p150 = scmp.ne.s32.totalorder %s138, %s139
    %p151 = scmp.eq.s32.totalorder %s24, 1
    %p152 = por %p150, %p151
    %p154 = scmp.ne.s32.totalorder %s139, %s153
    %p155 = scmp.eq.s32.totalorder %s24, 0
    %p156 = por %p154, %p155
    %s158 = sadd.s32 %s157, 1
    %p161 = scmp.eq.s32.totalorder %s18, 1
    %p162 = scmp.ne.s32.totalorder %s157, %s159
    %p163 = scmp.eq.s32.totalorder %s18, 0
    %p164 = por %p162, %p163
    %p165 = scmp.ne.s32.totalorder %s157, %s159
    %p166 = scmp.eq.s32.totalorder %s23, 1
    %p167 = por %p165, %p166
    %p168 = scmp.ne.s32.totalorder %s159, %s160
    %p169 = scmp.eq.s32.totalorder %s23, 0
    %p170 = por %p168, %p169
    %p171 = scmp.ne.s32.totalorder %s159, %s160
    %p172 = scmp.eq.s32.totalorder %s24, 1
    %p173 = por %p171, %p172
    %p175 = scmp.ne.s32.totalorder %s160, %s174
    %p176 = scmp.eq.s32.totalorder %s24, 0
    %p177 = por %p175, %p176
    %s179 = sadd.s32 %s178, 1
    %p182 = scmp.eq.s32.totalorder %s18, 1
    %p183 = scmp.ne.s32.totalorder %s178, %s180
    %p184 = scmp.eq.s32.totalorder %s18, 0
    %p185 = por %p183, %p184
    %p186 = scmp.ne.s32.totalorder %s178, %s180
    %p187 = scmp.eq.s32.totalorder %s23, 1
    %p188 = por %p186, %p187
    %p189 = scmp.ne.s32.totalorder %s180, %s181
    %p190 = scmp.eq.s32.totalorder %s23, 0
    %p191 = por %p189, %p190
    %p192 = scmp.ne.s32.totalorder %s180, %s181
    %p193 = scmp.eq.s32.totalorder %s24, 1
    %p194 = por %p192, %p193
    %p196 = scmp.ne.s32.totalorder %s181, %s195
    %p197 = scmp.eq.s32.totalorder %s24, 0
    %p198 = por %p196, %p197
    %s200 = sadd.s32 %s199, 1
    %p203 = scmp.eq.s32.totalorder %s18, 1
    %p204 = scmp.ne.s32.totalorder %s199, %s201
    %p205 = scmp.eq.s32.totalorder %s18, 0
    %p206 = por %p204, %p205
    %p207 = scmp.ne.s32.totalorder %s199, %s201
    %p208 = scmp.eq.s32.totalorder %s23, 1
    %p209 = por %p207, %p208
    %p210 = scmp.ne.s32.totalorder %s201, %s202
    %p211 = scmp.eq.s32.totalorder %s23, 0
    %p212 = por %p210, %p211
    %p213 = scmp.ne.s32.totalorder %s201, %s202
    %p214 = scmp.eq.s32.totalorder %s24, 1
    %p215 = por %p213, %p214
    %p217 = scmp.ne.s32.totalorder %s202, %s216
    %p218 = scmp.eq.s32.totalorder %s24, 0
    %p219 = por %p217, %p218
    %s221 = sadd.s32 %s220, 1
    %p224 = scmp.eq.s32.totalorder %s18, 1
    %p225 = scmp.ne.s32.totalorder %s220, %s222
    %p226 = scmp.eq.s32.totalorder %s18, 0
    %p227 = por %p225, %p226
    %p228 = scmp.ne.s32.totalorder %s220, %s222
    %p229 = scmp.eq.s32.totalorder %s23, 1
    %p230 = por %p228, %p229
    %p231 = scmp.ne.s32.totalorder %s222, %s223
    %p232 = scmp.eq.s32.totalorder %s23, 0
    %p233 = por %p231, %p232
    %p234 = scmp.ne.s32.totalorder %s222, %s223
    %p235 = scmp.eq.s32.totalorder %s24, 1
    %p236 = por %p234, %p235
    %p238 = scmp.ne.s32.totalorder %s223, %s237
    %p239 = scmp.eq.s32.totalorder %s24, 0
    %p240 = por %p238, %p239
    %s242 = sadd.s32 %s241, 1
    %p245 = scmp.eq.s32.totalorder %s18, 1
    %p246 = scmp.ne.s32.totalorder %s241, %s243
    %p247 = scmp.eq.s32.totalorder %s18, 0
    %p248 = por %p246, %p247
    %p249 = scmp.ne.s32.totalorder %s241, %s243
    %p250 = scmp.eq.s32.totalorder %s23, 1
    %p251 = por %p249, %p250
    %p252 = scmp.ne.s32.totalorder %s243, %s244
    %p253 = scmp.eq.s32.totalorder %s23, 0
    %p254 = por %p252, %p253
    %p255 = scmp.ne.s32.totalorder %s243, %s244
    %p256 = scmp.eq.s32.totalorder %s24, 1
    %p257 = por %p255, %p256
    %p259 = scmp.ne.s32.totalorder %s244, %s258
    %p260 = scmp.eq.s32.totalorder %s24, 0
    %p261 = por %p259, %p260
    %s263 = sadd.s32 %s262, 1
    %p266 = scmp.eq.s32.totalorder %s18, 1
    %p267 = scmp.ne.s32.totalorder %s262, %s264
    %p268 = scmp.eq.s32.totalorder %s18, 0
    %p269 = por %p267, %p268
    %p270 = scmp.ne.s32.totalorder %s262, %s264
    %p271 = scmp.eq.s32.totalorder %s23, 1
    %p272 = por %p270, %p271
    %p273 = scmp.ne.s32.totalorder %s264, %s265
    %p274 = scmp.eq.s32.totalorder %s23, 0
    %p275 = por %p273, %p274
    %p276 = scmp.ne.s32.totalorder %s264, %s265
    %p277 = scmp.eq.s32.totalorder %s24, 1
    %p278 = por %p276, %p277
    %p280 = scmp.ne.s32.totalorder %s265, %s279
    %p281 = scmp.eq.s32.totalorder %s24, 0
    %p282 = por %p280, %p281
    %s283 = ssub.s32 %s18, %s25
    %p284 = scmp.eq.s32.totalorder %s283, 0
    %s286 = sadd.s32 %s285, 1
    %s287 = scalar_select %p284, %s285, %s286
    %p290 = pneg %p284
    %p291 = scmp.eq.s32.totalorder %s18, 1
    %p292 = por %p290, %p291
    %p293 = scmp.ne.s32.totalorder %s285, %s288
    %p294 = scmp.eq.s32.totalorder %s18, 0
    %p295 = por %p293, %p294
    %p296 = scmp.ne.s32.totalorder %s285, %s288
    %p297 = scmp.eq.s32.totalorder %s23, 1
    %p298 = por %p296, %p297
    %p299 = scmp.ne.s32.totalorder %s288, %s289
    %p300 = scmp.eq.s32.totalorder %s23, 0
    %p301 = por %p299, %p300
    %p302 = scmp.ne.s32.totalorder %s288, %s289
    %p303 = scmp.eq.s32.totalorder %s24, 1
    %p304 = por %p302, %p303
    %p306 = scmp.ne.s32.totalorder %s289, %s305
    %p307 = scmp.eq.s32.totalorder %s24, 0
    %p308 = por %p306, %p307
    %p309 = scmp.le.s32.totalorder 1, %s18
    %p310 = scmp.lt.s32.totalorder %s18, 3
    %p311 = pnand %p309, %p310
    %p312 = pneg %p311
    // Predicated region
    $region9: #{_fused_forward.1} parent=5 // pred_check
      _
    $region10: #{_fused_forward.1} parent=5 // pred_check_branch
      %314 = sbr.rel (%p311) target = $region12
    $region11: #{_fused_forward.1} parent=5 // pred_region
      %s315 = ssub.s32 %s18, 1
      // Predicated region
      $region13: #{_fused_forward.1} parent=11 // pred_check
        %p316 = pneg %p65
      $region14: #{_fused_forward.1} parent=11 // pred_check_branch
        %318 = sbr.rel (%p316) target = $region16
      $region15: #{_fused_forward.1} parent=11 // pred_region
        _
      $region16: #{_fused_forward.1} parent=11 // pred_fallthru
        _
      // Predicated region
      $region17: #{_fused_forward.1} parent=11 // pred_check
        %p319 = pneg %p86
      $region18: #{_fused_forward.1} parent=11 // pred_check_branch
        %321 = sbr.rel (%p319) target = $region20
      $region19: #{_fused_forward.1} parent=11 // pred_region
        _
      $region20: #{_fused_forward.1} parent=11 // pred_fallthru
        _
      // Predicated region
      $region21: #{_fused_forward.1} parent=11 // pred_check
        %p322 = pneg %p107
      $region22: #{_fused_forward.1} parent=11 // pred_check_branch
        %324 = sbr.rel (%p322) target = $region24
      $region23: #{_fused_forward.1} parent=11 // pred_region
        _
      $region24: #{_fused_forward.1} parent=11 // pred_fallthru
        _
      // Predicated region
      $region25: #{_fused_forward.1} parent=11 // pred_check
        %p325 = pneg %p128
      $region26: #{_fused_forward.1} parent=11 // pred_check_branch
        %327 = sbr.rel (%p325) target = $region28
      $region27: #{_fused_forward.1} parent=11 // pred_region
        _
      $region28: #{_fused_forward.1} parent=11 // pred_fallthru
        _
      // Predicated region
      $region29: #{_fused_forward.1} parent=11 // pred_check
        %p328 = pneg %p149
      $region30: #{_fused_forward.1} parent=11 // pred_check_branch
        %330 = sbr.rel (%p328) target = $region32
      $region31: #{_fused_forward.1} parent=11 // pred_region
        _
      $region32: #{_fused_forward.1} parent=11 // pred_fallthru
        _
      // Predicated region
      $region33: #{_fused_forward.1} parent=11 // pred_check
        %p331 = pneg %p170
      $region34: #{_fused_forward.1} parent=11 // pred_check_branch
        %333 = sbr.rel (%p331) target = $region36
      $region35: #{_fused_forward.1} parent=11 // pred_region
        _
      $region36: #{_fused_forward.1} parent=11 // pred_fallthru
        _
      // Predicated region
      $region37: #{_fused_forward.1} parent=11 // pred_check
        %p334 = pneg %p191
      $region38: #{_fused_forward.1} parent=11 // pred_check_branch
        %336 = sbr.rel (%p334) target = $region40
      $region39: #{_fused_forward.1} parent=11 // pred_region
        _
      $region40: #{_fused_forward.1} parent=11 // pred_fallthru
        _
      // Predicated region
      $region41: #{_fused_forward.1} parent=11 // pred_check
        %p337 = pneg %p212
      $region42: #{_fused_forward.1} parent=11 // pred_check_branch
        %339 = sbr.rel (%p337) target = $region44
      $region43: #{_fused_forward.1} parent=11 // pred_region
        _
      $region44: #{_fused_forward.1} parent=11 // pred_fallthru
        _
      // Predicated region
      $region45: #{_fused_forward.1} parent=11 // pred_check
        %p340 = pneg %p233
      $region46: #{_fused_forward.1} parent=11 // pred_check_branch
        %342 = sbr.rel (%p340) target = $region48
      $region47: #{_fused_forward.1} parent=11 // pred_region
        _
      $region48: #{_fused_forward.1} parent=11 // pred_fallthru
        _
      // Predicated region
      $region49: #{_fused_forward.1} parent=11 // pred_check
        %p343 = pneg %p254
      $region50: #{_fused_forward.1} parent=11 // pred_check_branch
        %345 = sbr.rel (%p343) target = $region52
      $region51: #{_fused_forward.1} parent=11 // pred_region
        _
      $region52: #{_fused_forward.1} parent=11 // pred_fallthru
        _
      // Predicated region
      $region53: #{_fused_forward.1} parent=11 // pred_check
        %p346 = pneg %p275
      $region54: #{_fused_forward.1} parent=11 // pred_check_branch
        %348 = sbr.rel (%p346) target = $region56
      $region55: #{_fused_forward.1} parent=11 // pred_region
        _
      $region56: #{_fused_forward.1} parent=11 // pred_fallthru
        _
    $region12: #{_fused_forward.1} parent=5 // pred_fallthru
      _
    %p349 = scmp.lt.s32.totalorder %s18, 2
    // Predicated region
    $region57: #{_fused_forward.1} parent=5 // pred_check
      %p350 = pneg %p349
    $region58: #{_fused_forward.1} parent=5 // pred_check_branch
      %352 = sbr.rel (%p350) target = $region60
    $region59: #{_fused_forward.1} parent=5 // pred_region
      // Predicated region
      $region61: #{_fused_forward.1} parent=59 // pred_check
        %p353 = pneg %p38
      $region62: #{_fused_forward.1} parent=59 // pred_check_branch
        %355 = sbr.rel (%p353) target = $region64
      $region63: #{_fused_forward.1} parent=59 // pred_region
        %p356 = scmp.lt.s32.totalorder %s18, 1
        %s357 = scalar_select %p356, %s18, 1
        %s358 = smul.addr %s357, 6
        %s359 = smul.addr %s358, 4
        %s360 = scalar_lea.vmem %s0, %s359
      $region64: #{_fused_forward.1} parent=59 // pred_fallthru
        _
    $region60: #{_fused_forward.1} parent=5 // pred_fallthru
      _
    %p361 = scmp.le.s32.totalorder 1, %s18
    %p362 = scmp.lt.s32.totalorder %s18, 3
    %p363 = pnand %p361, %p362
    %p364 = pneg %p363
    // Predicated region
    $region65: #{_fused_forward.1} parent=5 // pred_check
      _
    $region66: #{_fused_forward.1} parent=5 // pred_check_branch
      %366 = sbr.rel (%p363) target = $region68
    $region67: #{_fused_forward.1} parent=5 // pred_region
      %s367 = ssub.s32 %s18, 1
      %p368 = scmp.lt.s32.totalorder %s23, 1
      %s369 = scalar_select %p368, %s23, 1
      %s370 = smul.addr %s369, 6
      %s371 = smul.addr %s370, 4
      %s372 = scalar_lea.vmem %s0, %s371
      %p373 = pneg %p44
      %p374 = pneg %p41
      %p375 = pneg %p65
      %p376 = pneg %p62
      %p377 = pneg %p86
      %p378 = pneg %p83
      %p379 = pneg %p107
      %p380 = pneg %p104
      %p381 = pneg %p128
      %p382 = pneg %p125
      %p383 = pneg %p149
      %p384 = pneg %p146
      %p385 = pneg %p170
      %p386 = pneg %p167
      %p387 = pneg %p191
      %p388 = pneg %p188
      %p389 = pneg %p212
      %p390 = pneg %p209
      %p391 = pneg %p233
      %p392 = pneg %p230
      %p393 = pneg %p254
      %p394 = pneg %p251
      %p395 = pneg %p275
      %p396 = pneg %p272
      %p397 = pneg %p301
      %p398 = pneg %p298
      %p399 = scmp.lt.s32.totalorder %s23, 1
      %s400 = scalar_select %p399, %s23, 1
      %s401 = smul.addr %s400, 8
      %s402 = scalar_lea.vmem %s12, %s401
      %p403 = scmp.lt.s32.totalorder %s23, 1
      %s404 = scalar_select %p403, %s23, 1
      %s405 = smul.addr %s404, 6
      %s406 = smul.addr %s405, 4
      %s407 = scalar_lea.vmem %s0, %s406
      %p408 = scmp.lt.s32.totalorder %s23, 1
      %s409 = scalar_select %p408, %s23, 1
      %s410 = smul.addr %s409, 8
      %s411 = scalar_lea.vmem %s12, %s410
      %vm413 = vcmask 191488
      %414 = vst.msk [vmem:[#allocation2] sm:$0xf] %vm413, 0
      %415 = vst.msk [vmem:[#allocation2 + $0xc] sm:$0xf] %vm413, 0
      %vm416 = vcmask 945888
      %417 = vst.msk [vmem:[#allocation2 + $0x8] sm:$0xf] %vm416, 0
      %418 = vst.msk [vmem:[#allocation2 + $0x14] sm:$0xf] %vm416, 0
      %v419 = vld [vmem:[%s407] sm:$0xff]
      %v420 = vld [vmem:[%s407 + $0x8] sm:$0xf]
      %v421 = vld [vmem:[%s407 + $0xc] sm:$0xff]
      %v422 = vld [vmem:[%s407 + $0x14] sm:$0xf]
      %v427 = vunpack.c.l.b16 %v419
      %v428 = vunpack.c.h.b16 %v419
      %v429 = vunpack.c.l.b16 %v420
      %v430 = vunpack.c.l.b16 %v421
      %v431 = vunpack.c.h.b16 %v421
      %v432 = vunpack.c.l.b16 %v422
      %v433 = vpack.c.b16 %v430, %v427
      %v434 = vpack.c.b16 %v431, %v428
      %v435 = vpack.c.b16 %v432, %v429
      %436 = vrot.lane.b32.xlu0 %v433, 127
      %v437 = vpop.permute.xlu0 %436
      %438 = vrot.lane.b32.xlu0 %v434, 127
      %v439 = vpop.permute.xlu0 %438
      %440 = vrot.lane.b32.xlu0 %v435, 127
      %v441 = vpop.permute.xlu0 %440
      %vm442 = vcmask 1039360
      %v443 = vsel %vm442, %v437, %v439
      %v444 = vsel %vm442, %v439, %v441
      %445 = vrot.lane.b32.xlu0 %v433, 126
      %v446 = vpop.permute.xlu0 %445
      %447 = vrot.lane.b32.xlu0 %v434, 126
      %v448 = vpop.permute.xlu0 %447
      %449 = vrot.lane.b32.xlu0 %v435, 126
      %v450 = vpop.permute.xlu0 %449
      %vm451 = vcmask 1031168
      %v452 = vsel %vm451, %v446, %v448
      %v453 = vsel %vm451, %v448, %v450
      %454 = vrot.lane.b32.xlu0 %v433, 110
      %v455 = vpop.permute.xlu0 %454
      %456 = vrot.lane.b32.xlu0 %v434, 110
      %v457 = vpop.permute.xlu0 %456
      %458 = vrot.lane.b32.xlu0 %v435, 110
      %v459 = vpop.permute.xlu0 %458
      %vm460 = vcmask 900096
      %v461 = vsel %vm460, %v455, %v457
      %v462 = vsel %vm460, %v457, %v459
      %463 = vrot.lane.b32.xlu0 %v433, 109
      %v464 = vpop.permute.xlu0 %463
      %465 = vrot.lane.b32.xlu0 %v434, 109
      %v466 = vpop.permute.xlu0 %465
      %467 = vrot.lane.b32.xlu0 %v435, 109
      %v468 = vpop.permute.xlu0 %467
      %vm469 = vcmask 891904
      %v470 = vsel %vm469, %v464, %v466
      %v471 = vsel %vm469, %v466, %v468
      %472 = vrot.lane.b32.xlu0 %v433, 108
      %v473 = vpop.permute.xlu0 %472
      %474 = vrot.lane.b32.xlu0 %v434, 108
      %v475 = vpop.permute.xlu0 %474
      %476 = vrot.lane.b32.xlu0 %v435, 108
      %v477 = vpop.permute.xlu0 %476
      %vm478 = vcmask 883712
      %v479 = vsel %vm478, %v473, %v475
      %v480 = vsel %vm478, %v475, %v477
      %481 = vrot.lane.b32.xlu0 %v433, 92
      %v482 = vpop.permute.xlu0 %481
      %483 = vrot.lane.b32.xlu0 %v434, 92
      %v484 = vpop.permute.xlu0 %483
      %485 = vrot.lane.b32.xlu0 %v435, 92
      %v486 = vpop.permute.xlu0 %485
      %vm487 = vcmask 752640
      %v488 = vsel %vm487, %v482, %v484
      %v489 = vsel %vm487, %v484, %v486
      %490 = vrot.lane.b32.xlu0 %v433, 91
      %v491 = vpop.permute.xlu0 %490
      %492 = vrot.lane.b32.xlu0 %v434, 91
      %v493 = vpop.permute.xlu0 %492
      %494 = vrot.lane.b32.xlu0 %v435, 91
      %v495 = vpop.permute.xlu0 %494
      %vm496 = vcmask 744448
      %v497 = vsel %vm496, %v491, %v493
      %v498 = vsel %vm496, %v493, %v495
      %499 = vrot.lane.b32.xlu0 %v433, 90
      %v500 = vpop.permute.xlu0 %499
      %501 = vrot.lane.b32.xlu0 %v434, 90
      %v502 = vpop.permute.xlu0 %501
      %503 = vrot.lane.b32.xlu0 %v435, 90
      %v504 = vpop.permute.xlu0 %503
      %vm505 = vcmask 736256
      %v506 = vsel %vm505, %v500, %v502
      %v507 = vsel %vm505, %v502, %v504
      %v508 = vld [vmem:[%s3] sm:$0xff]
      %v509 = vld [vmem:[%s3 + $0x8] sm:$0xff]
      %v510 = vld [vmem:[%s4] sm:$0xff]
      %v511 = vld [vmem:[%s4 + $0x8] sm:$0xff]
      %513 = vset.pattern.permute.xlu0 0
      %514 = vperm.xlu0 %513, %v510
      %v515 = vpop.permute.xlu0 %514
      %518 = vset.pattern.permute.xlu0 0
      %519 = vperm.xlu0 %518, %v511
      %v520 = vpop.permute.xlu0 %519
      %v524 = vunpack.c.l.b16 %v508
      %v525 = vunpack.c.h.b16 %v508
      %v526 = vunpack.c.l.b16 %v509
      %v527 = vunpack.c.h.b16 %v509
      %v528 = vpack.c.b16 %v526, %v524
      %v529 = vpack.c.b16 %v527, %v525
      %531 = vrot.lane.b32.xlu0 %v433, 123
      %v532 = vpop.permute.xlu0 %531
      %533 = vrot.lane.b32.xlu0 %v434, 123
      %v534 = vpop.permute.xlu0 %533
      %535 = vrot.lane.b32.xlu0 %v435, 123
      %v536 = vpop.permute.xlu0 %535
      %537 = vrot.lane.b32.xlu0 %v443, 123
      %v538 = vpop.permute.xlu0 %537
      %539 = vrot.lane.b32.xlu0 %v444, 123
      %v540 = vpop.permute.xlu0 %539
      %541 = vrot.lane.b32.xlu0 %v441, 123
      %v542 = vpop.permute.xlu0 %541
      %543 = vrot.lane.b32.xlu0 %v452, 123
      %v544 = vpop.permute.xlu0 %543
      %545 = vrot.lane.b32.xlu0 %v453, 123
      %v546 = vpop.permute.xlu0 %545
      %547 = vrot.lane.b32.xlu0 %v450, 123
      %v548 = vpop.permute.xlu0 %547
      %549 = vrot.lane.b32.xlu0 %v461, 123
      %v550 = vpop.permute.xlu0 %549
      %551 = vrot.lane.b32.xlu0 %v462, 123
      %v552 = vpop.permute.xlu0 %551
      %553 = vrot.lane.b32.xlu0 %v459, 123
      %v554 = vpop.permute.xlu0 %553
      %555 = vrot.lane.b32.xlu0 %v470, 123
      %v556 = vpop.permute.xlu0 %555
      %557 = vrot.lane.b32.xlu0 %v471, 123
      %v558 = vpop.permute.xlu0 %557
      %559 = vrot.lane.b32.xlu0 %v468, 123
      %v560 = vpop.permute.xlu0 %559
      %561 = vrot.lane.b32.xlu0 %v479, 123
      %v562 = vpop.permute.xlu0 %561
      %563 = vrot.lane.b32.xlu0 %v480, 123
      %v564 = vpop.permute.xlu0 %563
      %565 = vrot.lane.b32.xlu0 %v477, 123
      %v566 = vpop.permute.xlu0 %565
      %567 = vrot.lane.b32.xlu0 %v488, 123
      %v568 = vpop.permute.xlu0 %567
      %569 = vrot.lane.b32.xlu0 %v489, 123
      %v570 = vpop.permute.xlu0 %569
      %571 = vrot.lane.b32.xlu0 %v486, 123
      %v572 = vpop.permute.xlu0 %571
      %573 = vrot.lane.b32.xlu0 %v497, 123
      %v574 = vpop.permute.xlu0 %573
      %575 = vrot.lane.b32.xlu0 %v498, 123
      %v576 = vpop.permute.xlu0 %575
      %577 = vrot.lane.b32.xlu0 %v495, 123
      %v578 = vpop.permute.xlu0 %577
      %579 = vrot.lane.b32.xlu0 %v506, 123
      %v580 = vpop.permute.xlu0 %579
      %581 = vrot.lane.b32.xlu0 %v507, 123
      %v582 = vpop.permute.xlu0 %581
      %583 = vrot.lane.b32.xlu0 %v504, 123
      %v584 = vpop.permute.xlu0 %583
      %vm585 = vcmask 1006592
      %v586 = vsel %vm585, %v532, %v534
      %v587 = vsel %vm585, %v534, %v536
      %v588 = vsel %vm585, %v538, %v540
      %v589 = vsel %vm585, %v540, %v542
      %v590 = vsel %vm585, %v544, %v546
      %v591 = vsel %vm585, %v546, %v548
      %v592 = vsel %vm585, %v550, %v552
      %v593 = vsel %vm585, %v552, %v554
      %v594 = vsel %vm585, %v556, %v558
      %v595 = vsel %vm585, %v558, %v560
      %v596 = vsel %vm585, %v562, %v564
      %v597 = vsel %vm585, %v564, %v566
      %v598 = vsel %vm585, %v568, %v570
      %v599 = vsel %vm585, %v570, %v572
      %v600 = vsel %vm585, %v574, %v576
      %v601 = vsel %vm585, %v576, %v578
      %v602 = vsel %vm585, %v580, %v582
      %v603 = vsel %vm585, %v582, %v584
      %vm631 = vcmask 130048
      %v633 = vsel %vm631, %v529, 0
      %635 = vmatprep.subr.bf16.mxu0 %v601
      %636 = vmatpush1.bf16.msra.mxu0 %v600
      %637 = vmatprep.subr.bf16.mxu0 %v599
      %638 = vmatpush1.bf16.msra.mxu0 %v598
      %639 = vmatprep.subr.bf16.mxu0 %v597
      %640 = vmatpush1.bf16.msra.mxu0 %v596
      %641 = vmatprep.subr.bf16.mxu0 %v595
      %642 = vmatpush1.bf16.msra.mxu0 %v594
      %643 = vmatprep.subr.bf16.mxu0 %v593
      %644 = vmatpush1.bf16.msra.mxu0 %v592
      %645 = vmatprep.subr.bf16.mxu0 %v591
      %646 = vmatpush1.bf16.msra.mxu0 %v590
      %647 = vmatprep.subr.bf16.mxu0 %v589
      %648 = vmatpush1.bf16.msra.mxu0 %v588
      %649 = vmatprep.subr.bf16.mxu0 %v587
      %650 = vmatpush1.bf16.msra.mxu0 %v586
      %651 = vmatprep.subr.bf16.mxu0 0
      %652 = vmatpush2.bf16.msra.mxu0 0
      %653 = vmatprep.subr.bf16.mxu0 0
      %654 = vmatpush2.bf16.msra.mxu0 0
      %655 = vmatprep.subr.bf16.mxu0 0
      %656 = vmatpush2.bf16.msra.mxu0 0
      %657 = vmatprep.subr.bf16.mxu0 0
      %658 = vmatpush2.bf16.msra.mxu0 0
      %659 = vmatprep.subr.bf16.mxu0 0
      %660 = vmatpush2.bf16.msra.mxu0 0
      %661 = vmatprep.subr.bf16.mxu0 0
      %662 = vmatpush2.bf16.msra.mxu0 0
      %663 = vmatprep.subr.bf16.mxu0 0
      %664 = vmatpush2.bf16.msra.mxu0 0
      %665 = vmatprep.subr.bf16.mxu0 %v603
      %666 = vmatpush2.bf16.msra.mxu0 %v602
      %667 = vmatprep.mubr.bf16.mxu0 %v633
      %668 = vmatmul.mubr.bf16.gmra.mxu0 %v528
      %v669 = vpop.f32.mrf.mxu0
      %v670 = vadd.f32 %v515, %v669
      %v671 = vpop.f32.mrf.mxu0
      %v672 = vadd.f32 %v515, %v671
      %v673 = vpop.f32.mrf.mxu0
      %v674 = vadd.f32 %v520, %v673
      %v675 = vpop.f32.mrf.mxu0
      %v676 = vadd.f32 %v520, %v675
      %677 = vdwg.mxu0
      %678 = vmatprep.subr.bf16.mxu0 0
      %679 = vmatpush1.bf16.msra.mxu0 %v578
      %680 = vmatprep.subr.bf16.mxu0 0
      %681 = vmatpush1.bf16.msra.mxu0 %v572
      %682 = vmatprep.subr.bf16.mxu0 0
      %683 = vmatpush1.bf16.msra.mxu0 %v566
      %684 = vmatprep.subr.bf16.mxu0 0
      %685 = vmatpush1.bf16.msra.mxu0 %v560
      %686 = vmatprep.subr.bf16.mxu0 0
      %687 = vmatpush1.bf16.msra.mxu0 %v554
      %688 = vmatprep.subr.bf16.mxu0 0
      %689 = vmatpush1.bf16.msra.mxu0 %v548
      %690 = vmatprep.subr.bf16.mxu0 0
      %691 = vmatpush1.bf16.msra.mxu0 %v542
      %692 = vmatprep.subr.bf16.mxu0 0
      %693 = vmatpush1.bf16.msra.mxu0 %v536
      %694 = vmatprep.subr.bf16.mxu0 0
      %695 = vmatpush2.bf16.msra.mxu0 0
      %696 = vmatprep.subr.bf16.mxu0 0
      %697 = vmatpush2.bf16.msra.mxu0 0
      %698 = vmatprep.subr.bf16.mxu0 0
      %699 = vmatpush2.bf16.msra.mxu0 0
      %700 = vmatprep.subr.bf16.mxu0 0
      %701 = vmatpush2.bf16.msra.mxu0 0
      %702 = vmatprep.subr.bf16.mxu0 0
      %703 = vmatpush2.bf16.msra.mxu0 0
      %704 = vmatprep.subr.bf16.mxu0 0
      %705 = vmatpush2.bf16.msra.mxu0 0
      %706 = vmatprep.subr.bf16.mxu0 0
      %707 = vmatpush2.bf16.msra.mxu0 0
      %708 = vmatprep.subr.bf16.mxu0 0
      %709 = vmatpush2.bf16.msra.mxu0 %v584
      %710 = vmatprep.mubr.bf16.mxu0 %v633
      %711 = vmatmul.mubr.bf16.gmra.mxu0 %v528
      %v712 = vpop.f32.mrf.mxu0
      %v713 = vadd.f32 %v515, %v712
      %v714 = vpop.f32.mrf.mxu0
      %v715 = vpop.f32.mrf.mxu0
      %v716 = vadd.f32 %v520, %v715
      %v717 = vpop.f32.mrf.mxu0
      %718 = vdwg.mxu0
      %v719 = vxor.u32 %v670, 2147483648
      %v720 = vxor.u32 %v672, 2147483648
      %v721 = vxor.u32 %v713, 2147483648
      %v722 = vxor.u32 %v674, 2147483648
      %v723 = vxor.u32 %v676, 2147483648
      %v724 = vxor.u32 %v716, 2147483648
      %v725 = vmul.f32 %v719, 1.442695
      %v726 = vpow.pop %v725
      %v727 = vmul.f32 %v720, 1.442695
      %v728 = vpow.pop %v727
      %v729 = vmul.f32 %v721, 1.442695
      %v730 = vpow.pop %v729
      %v731 = vmul.f32 %v722, 1.442695
      %v732 = vpow.pop %v731
      %v733 = vmul.f32 %v723, 1.442695
      %v734 = vpow.pop %v733
      %v735 = vmul.f32 %v724, 1.442695
      %v736 = vpow.pop %v735
      %v737 = vadd.f32 %v726, 1.0
      %v738 = vadd.f32 %v728, 1.0
      %v739 = vadd.f32 %v730, 1.0
      %v740 = vadd.f32 %v732, 1.0
      %v741 = vadd.f32 %v734, 1.0
      %v742 = vadd.f32 %v736, 1.0
      %v743 = vrcp.pop %v737
      %v744 = vmul.f32 1.0, %v743
      %v745 = vrcp.pop %v738
      %v746 = vmul.f32 1.0, %v745
      %v747 = vrcp.pop %v739
      %v748 = vmul.f32 1.0, %v747
      %v749 = vrcp.pop %v740
      %v750 = vmul.f32 1.0, %v749
      %v751 = vrcp.pop %v741
      %v752 = vmul.f32 1.0, %v751
      %v753 = vrcp.pop %v742
      %v754 = vmul.f32 1.0, %v753
      %v755 = vmul.f32 %v670, %v744
      %v756 = vmul.f32 %v672, %v746
      %v757 = vmul.f32 %v713, %v748
      %v758 = vmul.f32 %v674, %v750
      %v759 = vmul.f32 %v676, %v752
      %v760 = vmul.f32 %v716, %v754
      %v761 = vld [vmem:[%s2] sm:$0x7]
      %v763 = vlaneseq
      %v764 = vshrl.u32 %v763, 7
      %v765 = vsub.s32 0, %v764
      %v766 = vrot.slane %v761, %v765
      %v767 = vlaneseq
      %v768 = vshrl.u32 %v767, 7
      %v769 = vsub.s32 1, %v768
      %v770 = vrot.slane %v761, %v769
      %v771 = vlaneseq
      %v772 = vshrl.u32 %v771, 7
      %v773 = vsub.s32 2, %v772
      %v774 = vrot.slane %v761, %v773
      %v778 = vmul.f32 %v755, %v766
      %v779 = vmul.f32 %v756, %v770
      %v780 = vmul.f32 %v757, %v774
      %v781 = vmul.f32 %v758, %v766
      %v782 = vmul.f32 %v759, %v770
      %v783 = vmul.f32 %v760, %v774
      %v784 = vpack.c.bf16 %v781, %v778
      %v785 = vpack.c.bf16 %v782, %v779
      %v786 = vpack.c.bf16 %v783, %v780
      %v790 = vunpack.c.l.b16 %v784
      %v791 = vunpack.c.l.b16 %v785
      %v792 = vunpack.c.l.b16 %v786
      %v793 = vunpack.c.h.b16 %v784
      %v794 = vunpack.c.h.b16 %v785
      %v795 = vunpack.c.h.b16 %v786
      %v796 = vpack.c.b16 %v791, %v790
      %v797 = vpack.c.b16 %v792, %v792
      %v798 = vpack.c.b16 %v794, %v793
      %v799 = vpack.c.b16 %v795, %v795
      %800 = vrot.lane.b32.xlu0 %v796, 24
      %v801 = vpop.permute.xlu0 %800
      %802 = vrot.lane.b32.xlu0 %v797, 24
      %v803 = vpop.permute.xlu0 %802
      %804 = vrot.lane.b32.xlu0 %v798, 24
      %v805 = vpop.permute.xlu0 %804
      %806 = vrot.lane.b32.xlu0 %v799, 24
      %v807 = vpop.permute.xlu0 %806
      %v808 = vrot.slane %v801, 4
      %v809 = vrot.slane %v805, 4
      %vm810 = vcmask 195584
      %v811 = vsel %vm810, %v808, %v801
      %v812 = vsel %vm810, %v808, %v803
      %v813 = vsel %vm810, %v809, %v805
      %v814 = vsel %vm810, %v809, %v807
      %vm819 = vcmask 1043648
      %vm820 = vcmask 1047556
      %vm821 = vmor %vm820, %vm819
      %822 = vst.msk [vmem:[#allocation2] sm:$0xff] %vm821, %v811
      %vm823 = vcmask 748544
      %824 = vst.msk [vmem:[#allocation2 + $0x8] sm:$0xf] %vm823, %v812
      %825 = vst.msk [vmem:[#allocation2 + $0xc] sm:$0xff] %vm821, %v813
      %826 = vst.msk [vmem:[#allocation2 + $0x14] sm:$0xf] %vm823, %v814
      %v827 = vld [vmem:[#allocation2] sm:$0xff]
      %v828 = vld [vmem:[#allocation2 + $0x8] sm:$0xf]
      %v829 = vld [vmem:[#allocation2 + $0xc] sm:$0xff]
      %v830 = vld [vmem:[#allocation2 + $0x14] sm:$0xf]
      %v835 = vunpack.c.l.b16 %v827
      %v836 = vunpack.c.h.b16 %v827
      %v837 = vunpack.c.l.b16 %v828
      %v838 = vunpack.c.l.b16 %v829
      %v839 = vunpack.c.h.b16 %v829
      %v840 = vunpack.c.l.b16 %v830
      %v841 = vpack.c.b16 %v838, %v835
      %v842 = vpack.c.b16 %v839, %v836
      %v843 = vpack.c.b16 %v840, %v837
      %844 = vrot.lane.b32.xlu0 %v841, 127
      %v845 = vpop.permute.xlu0 %844
      %846 = vrot.lane.b32.xlu0 %v842, 127
      %v847 = vpop.permute.xlu0 %846
      %848 = vrot.lane.b32.xlu0 %v843, 127
      %v849 = vpop.permute.xlu0 %848
      %v850 = vsel %vm442, %v845, %v847
      %v851 = vsel %vm442, %v847, %v849
      %852 = vrot.lane.b32.xlu0 %v841, 126
      %v853 = vpop.permute.xlu0 %852
      %854 = vrot.lane.b32.xlu0 %v842, 126
      %v855 = vpop.permute.xlu0 %854
      %856 = vrot.lane.b32.xlu0 %v843, 126
      %v857 = vpop.permute.xlu0 %856
      %v858 = vsel %vm451, %v853, %v855
      %v859 = vsel %vm451, %v855, %v857
      %860 = vrot.lane.b32.xlu0 %v841, 110
      %v861 = vpop.permute.xlu0 %860
      %862 = vrot.lane.b32.xlu0 %v842, 110
      %v863 = vpop.permute.xlu0 %862
      %864 = vrot.lane.b32.xlu0 %v843, 110
      %v865 = vpop.permute.xlu0 %864
      %v866 = vsel %vm460, %v861, %v863
      %v867 = vsel %vm460, %v863, %v865
      %868 = vrot.lane.b32.xlu0 %v841, 109
      %v869 = vpop.permute.xlu0 %868
      %870 = vrot.lane.b32.xlu0 %v842, 109
      %v871 = vpop.permute.xlu0 %870
      %872 = vrot.lane.b32.xlu0 %v843, 109
      %v873 = vpop.permute.xlu0 %872
      %v874 = vsel %vm469, %v869, %v871
      %v875 = vsel %vm469, %v871, %v873
      %876 = vrot.lane.b32.xlu0 %v841, 108
      %v877 = vpop.permute.xlu0 %876
      %878 = vrot.lane.b32.xlu0 %v842, 108
      %v879 = vpop.permute.xlu0 %878
      %880 = vrot.lane.b32.xlu0 %v843, 108
      %v881 = vpop.permute.xlu0 %880
      %v882 = vsel %vm478, %v877, %v879
      %v883 = vsel %vm478, %v879, %v881
      %884 = vrot.lane.b32.xlu0 %v841, 92
      %v885 = vpop.permute.xlu0 %884
      %886 = vrot.lane.b32.xlu0 %v842, 92
      %v887 = vpop.permute.xlu0 %886
      %888 = vrot.lane.b32.xlu0 %v843, 92
      %v889 = vpop.permute.xlu0 %888
      %v890 = vsel %vm487, %v885, %v887
      %v891 = vsel %vm487, %v887, %v889
      %892 = vrot.lane.b32.xlu0 %v841, 91
      %v893 = vpop.permute.xlu0 %892
      %894 = vrot.lane.b32.xlu0 %v842, 91
      %v895 = vpop.permute.xlu0 %894
      %896 = vrot.lane.b32.xlu0 %v843, 91
      %v897 = vpop.permute.xlu0 %896
      %v898 = vsel %vm496, %v893, %v895
      %v899 = vsel %vm496, %v895, %v897
      %900 = vrot.lane.b32.xlu0 %v841, 90
      %v901 = vpop.permute.xlu0 %900
      %902 = vrot.lane.b32.xlu0 %v842, 90
      %v903 = vpop.permute.xlu0 %902
      %904 = vrot.lane.b32.xlu0 %v843, 90
      %v905 = vpop.permute.xlu0 %904
      %v906 = vsel %vm505, %v901, %v903
      %v907 = vsel %vm505, %v903, %v905
      %v908 = vld [vmem:[%s5] sm:$0xff]
      %v909 = vld [vmem:[%s5 + $0x8] sm:$0xff]
      %v910 = vld [vmem:[%s6] sm:$0xff]
      %v911 = vld [vmem:[%s6 + $0x8] sm:$0xff]
      %913 = vset.pattern.permute.xlu0 0
      %914 = vperm.xlu0 %913, %v910
      %v915 = vpop.permute.xlu0 %914
      %918 = vset.pattern.permute.xlu0 0
      %919 = vperm.xlu0 %918, %v911
      %v920 = vpop.permute.xlu0 %919
      %v924 = vunpack.c.l.b16 %v908
      %v925 = vunpack.c.h.b16 %v908
      %v926 = vunpack.c.l.b16 %v909
      %v927 = vunpack.c.h.b16 %v909
      %v928 = vpack.c.b16 %v926, %v924
      %v929 = vpack.c.b16 %v927, %v925
      %931 = vrot.lane.b32.xlu0 %v841, 123
      %v932 = vpop.permute.xlu0 %931
      %933 = vrot.lane.b32.xlu0 %v842, 123
      %v934 = vpop.permute.xlu0 %933
      %935 = vrot.lane.b32.xlu0 %v843, 123
      %v936 = vpop.permute.xlu0 %935
      %937 = vrot.lane.b32.xlu0 %v850, 123
      %v938 = vpop.permute.xlu0 %937
      %939 = vrot.lane.b32.xlu0 %v851, 123
      %v940 = vpop.permute.xlu0 %939
      %941 = vrot.lane.b32.xlu0 %v849, 123
      %v942 = vpop.permute.xlu0 %941
      %943 = vrot.lane.b32.xlu0 %v858, 123
      %v944 = vpop.permute.xlu0 %943
      %945 = vrot.lane.b32.xlu0 %v859, 123
      %v946 = vpop.permute.xlu0 %945
      %947 = vrot.lane.b32.xlu0 %v857, 123
      %v948 = vpop.permute.xlu0 %947
      %949 = vrot.lane.b32.xlu0 %v866, 123
      %v950 = vpop.permute.xlu0 %949
      %951 = vrot.lane.b32.xlu0 %v867, 123
      %v952 = vpop.permute.xlu0 %951
      %953 = vrot.lane.b32.xlu0 %v865, 123
      %v954 = vpop.permute.xlu0 %953
      %955 = vrot.lane.b32.xlu0 %v874, 123
      %v956 = vpop.permute.xlu0 %955
      %957 = vrot.lane.b32.xlu0 %v875, 123
      %v958 = vpop.permute.xlu0 %957
      %959 = vrot.lane.b32.xlu0 %v873, 123
      %v960 = vpop.permute.xlu0 %959
      %961 = vrot.lane.b32.xlu0 %v882, 123
      %v962 = vpop.permute.xlu0 %961
      %963 = vrot.lane.b32.xlu0 %v883, 123
      %v964 = vpop.permute.xlu0 %963
      %965 = vrot.lane.b32.xlu0 %v881, 123
      %v966 = vpop.permute.xlu0 %965
      %967 = vrot.lane.b32.xlu0 %v890, 123
      %v968 = vpop.permute.xlu0 %967
      %969 = vrot.lane.b32.xlu0 %v891, 123
      %v970 = vpop.permute.xlu0 %969
      %971 = vrot.lane.b32.xlu0 %v889, 123
      %v972 = vpop.permute.xlu0 %971
      %973 = vrot.lane.b32.xlu0 %v898, 123
      %v974 = vpop.permute.xlu0 %973
      %975 = vrot.lane.b32.xlu0 %v899, 123
      %v976 = vpop.permute.xlu0 %975
      %977 = vrot.lane.b32.xlu0 %v897, 123
      %v978 = vpop.permute.xlu0 %977
      %979 = vrot.lane.b32.xlu0 %v906, 123
      %v980 = vpop.permute.xlu0 %979
      %981 = vrot.lane.b32.xlu0 %v907, 123
      %v982 = vpop.permute.xlu0 %981
      %983 = vrot.lane.b32.xlu0 %v905, 123
      %v984 = vpop.permute.xlu0 %983
      %v985 = vsel %vm585, %v932, %v934
      %v986 = vsel %vm585, %v934, %v936
      %v987 = vsel %vm585, %v938, %v940
      %v988 = vsel %vm585, %v940, %v942
      %v989 = vsel %vm585, %v944, %v946
      %v990 = vsel %vm585, %v946, %v948
      %v991 = vsel %vm585, %v950, %v952
      %v992 = vsel %vm585, %v952, %v954
      %v993 = vsel %vm585, %v956, %v958
      %v994 = vsel %vm585, %v958, %v960
      %v995 = vsel %vm585, %v962, %v964
      %v996 = vsel %vm585, %v964, %v966
      %v997 = vsel %vm585, %v968, %v970
      %v998 = vsel %vm585, %v970, %v972
      %v999 = vsel %vm585, %v974, %v976
      %v1000 = vsel %vm585, %v976, %v978
      %v1001 = vsel %vm585, %v980, %v982
      %v1002 = vsel %vm585, %v982, %v984
      %v1031 = vsel %vm631, %v929, 0
      %1033 = vmatprep.subr.bf16.mxu0 %v1000
      %1034 = vmatpush1.bf16.msra.mxu0 %v999
      %1035 = vmatprep.subr.bf16.mxu0 %v998
      %1036 = vmatpush1.bf16.msra.mxu0 %v997
      %1037 = vmatprep.subr.bf16.mxu0 %v996
      %1038 = vmatpush1.bf16.msra.mxu0 %v995
      %1039 = vmatprep.subr.bf16.mxu0 %v994
      %1040 = vmatpush1.bf16.msra.mxu0 %v993
      %1041 = vmatprep.subr.bf16.mxu0 %v992
      %1042 = vmatpush1.bf16.msra.mxu0 %v991
      %1043 = vmatprep.subr.bf16.mxu0 %v990
      %1044 = vmatpush1.bf16.msra.mxu0 %v989
      %1045 = vmatprep.subr.bf16.mxu0 %v988
      %1046 = vmatpush1.bf16.msra.mxu0 %v987
      %1047 = vmatprep.subr.bf16.mxu0 %v986
      %1048 = vmatpush1.bf16.msra.mxu0 %v985
      %1049 = vmatprep.subr.bf16.mxu0 0
      %1050 = vmatpush2.bf16.msra.mxu0 0
      %1051 = vmatprep.subr.bf16.mxu0 0
      %1052 = vmatpush2.bf16.msra.mxu0 0
      %1053 = vmatprep.subr.bf16.mxu0 0
      %1054 = vmatpush2.bf16.msra.mxu0 0
      %1055 = vmatprep.subr.bf16.mxu0 0
      %1056 = vmatpush2.bf16.msra.mxu0 0
      %1057 = vmatprep.subr.bf16.mxu0 0
      %1058 = vmatpush2.bf16.msra.mxu0 0
      %1059 = vmatprep.subr.bf16.mxu0 0
      %1060 = vmatpush2.bf16.msra.mxu0 0
      %1061 = vmatprep.subr.bf16.mxu0 0
      %1062 = vmatpush2.bf16.msra.mxu0 0
      %1063 = vmatprep.subr.bf16.mxu0 %v1002
      %1064 = vmatpush2.bf16.msra.mxu0 %v1001
      %1065 = vmatprep.mubr.bf16.mxu0 %v1031
      %1066 = vmatmul.mubr.bf16.gmra.mxu0 %v928
      %v1067 = vpop.f32.mrf.mxu0
      %v1068 = vadd.f32 %v915, %v1067
      %v1069 = vpop.f32.mrf.mxu0
      %v1070 = vadd.f32 %v915, %v1069
      %v1071 = vpop.f32.mrf.mxu0
      %v1072 = vadd.f32 %v920, %v1071
      %v1073 = vpop.f32.mrf.mxu0
      %v1074 = vadd.f32 %v920, %v1073
      %1075 = vdwg.mxu0
      %1076 = vmatprep.subr.bf16.mxu0 0
      %1077 = vmatpush1.bf16.msra.mxu0 %v978
      %1078 = vmatprep.subr.bf16.mxu0 0
      %1079 = vmatpush1.bf16.msra.mxu0 %v972
      %1080 = vmatprep.subr.bf16.mxu0 0
      %1081 = vmatpush1.bf16.msra.mxu0 %v966
      %1082 = vmatprep.subr.bf16.mxu0 0
      %1083 = vmatpush1.bf16.msra.mxu0 %v960
      %1084 = vmatprep.subr.bf16.mxu0 0
      %1085 = vmatpush1.bf16.msra.mxu0 %v954
      %1086 = vmatprep.subr.bf16.mxu0 0
      %1087 = vmatpush1.bf16.msra.mxu0 %v948
      %1088 = vmatprep.subr.bf16.mxu0 0
      %1089 = vmatpush1.bf16.msra.mxu0 %v942
      %1090 = vmatprep.subr.bf16.mxu0 0
      %1091 = vmatpush1.bf16.msra.mxu0 %v936
      %1092 = vmatprep.subr.bf16.mxu0 0
      %1093 = vmatpush2.bf16.msra.mxu0 0
      %1094 = vmatprep.subr.bf16.mxu0 0
      %1095 = vmatpush2.bf16.msra.mxu0 0
      %1096 = vmatprep.subr.bf16.mxu0 0
      %1097 = vmatpush2.bf16.msra.mxu0 0
      %1098 = vmatprep.subr.bf16.mxu0 0
      %1099 = vmatpush2.bf16.msra.mxu0 0
      %1100 = vmatprep.subr.bf16.mxu0 0
      %1101 = vmatpush2.bf16.msra.mxu0 0
      %1102 = vmatprep.subr.bf16.mxu0 0
      %1103 = vmatpush2.bf16.msra.mxu0 0
      %1104 = vmatprep.subr.bf16.mxu0 0
      %1105 = vmatpush2.bf16.msra.mxu0 0
      %1106 = vmatprep.subr.bf16.mxu0 0
      %1107 = vmatpush2.bf16.msra.mxu0 %v984
      %1108 = vmatprep.mubr.bf16.mxu0 %v1031
      %1109 = vmatmul.mubr.bf16.gmra.mxu0 %v928
      %v1110 = vpop.f32.mrf.mxu0
      %v1111 = vadd.f32 %v915, %v1110
      %v1112 = vpop.f32.mrf.mxu0
      %v1113 = vpop.f32.mrf.mxu0
      %v1114 = vadd.f32 %v920, %v1113
      %v1115 = vpop.f32.mrf.mxu0
      %1116 = vdwg.mxu0
      %v1117 = vxor.u32 %v1068, 2147483648
      %v1118 = vxor.u32 %v1070, 2147483648
      %v1119 = vxor.u32 %v1111, 2147483648
      %v1120 = vxor.u32 %v1072, 2147483648
      %v1121 = vxor.u32 %v1074, 2147483648
      %v1122 = vxor.u32 %v1114, 2147483648
      %v1123 = vmul.f32 %v1117, 1.442695
      %v1124 = vpow.pop %v1123
      %v1125 = vmul.f32 %v1118, 1.442695
      %v1126 = vpow.pop %v1125
      %v1127 = vmul.f32 %v1119, 1.442695
      %v1128 = vpow.pop %v1127
      %v1129 = vmul.f32 %v1120, 1.442695
      %v1130 = vpow.pop %v1129
      %v1131 = vmul.f32 %v1121, 1.442695
      %v1132 = vpow.pop %v1131
      %v1133 = vmul.f32 %v1122, 1.442695
      %v1134 = vpow.pop %v1133
      %v1135 = vadd.f32 %v1124, 1.0
      %v1136 = vadd.f32 %v1126, 1.0
      %v1137 = vadd.f32 %v1128, 1.0
      %v1138 = vadd.f32 %v1130, 1.0
      %v1139 = vadd.f32 %v1132, 1.0
      %v1140 = vadd.f32 %v1134, 1.0
      %v1141 = vrcp.pop %v1135
      %v1142 = vmul.f32 1.0, %v1141
      %v1143 = vrcp.pop %v1136
      %v1144 = vmul.f32 1.0, %v1143
      %v1145 = vrcp.pop %v1137
      %v1146 = vmul.f32 1.0, %v1145
      %v1147 = vrcp.pop %v1138
      %v1148 = vmul.f32 1.0, %v1147
      %v1149 = vrcp.pop %v1139
      %v1150 = vmul.f32 1.0, %v1149
      %v1151 = vrcp.pop %v1140
      %v1152 = vmul.f32 1.0, %v1151
      %v1153 = vmul.f32 %v1068, %v1142
      %v1154 = vmul.f32 %v1070, %v1144
      %v1155 = vmul.f32 %v1111, %v1146
      %v1156 = vmul.f32 %v1072, %v1148
      %v1157 = vmul.f32 %v1074, %v1150
      %v1158 = vmul.f32 %v1114, %v1152
      %v1159 = vpack.c.bf16 %v1156, %v1153
      %v1160 = vpack.c.bf16 %v1157, %v1154
      %v1161 = vpack.c.bf16 %v1158, %v1155
      %v1162 = vld [vmem:[%s1] sm:$0xff]
      %v1163 = vld [vmem:[%s1 + $0x8] sm:$0xff]
      %v1164 = vld [vmem:[%s1 + $0x10] sm:$0xff]
      %v1165 = vld [vmem:[%s1 + $0x18] sm:$0xff]
      %v1166 = vld [vmem:[%s1 + $0x20] sm:$0xff]
      %v1167 = vld [vmem:[%s1 + $0x28] sm:$0xff]
      %v1168 = vld [vmem:[%s1 + $0x30] sm:$0xff]
      %v1169 = vld [vmem:[%s1 + $0x38] sm:$0xff]
      %v1170 = vld [vmem:[%s1 + $0x40] sm:$0xff]
      %v1171 = vld [vmem:[%s1 + $0x48] sm:$0xff]
      %v1172 = vld [vmem:[%s1 + $0x50] sm:$0xff]
      %v1173 = vld [vmem:[%s1 + $0x58] sm:$0xff]
      %v1174 = vld [vmem:[%s1 + $0x60] sm:$0xff]
      %v1175 = vld [vmem:[%s1 + $0x68] sm:$0xff]
      %v1176 = vld [vmem:[%s1 + $0x70] sm:$0xff]
      %v1177 = vld [vmem:[%s1 + $0x78] sm:$0xff]
      %v1178 = vld [vmem:[%s1 + $0x80] sm:$0xff]
      %v1179 = vld [vmem:[%s1 + $0x88] sm:$0xff]
      %v1180 = vld [vmem:[%s1 + $0x90] sm:$0xff]
      %v1181 = vld [vmem:[%s1 + $0x98] sm:$0xff]
      %v1182 = vld [vmem:[%s1 + $0xa0] sm:$0xff]
      %v1183 = vld [vmem:[%s1 + $0xa8] sm:$0xff]
      %v1184 = vld [vmem:[%s1 + $0xb0] sm:$0xff]
      %v1185 = vld [vmem:[%s1 + $0xb8] sm:$0xff]
      %v1186 = vld [vmem:[%s1 + $0xc0] sm:$0xff]
      %v1187 = vld [vmem:[%s1 + $0xc8] sm:$0xff]
      %v1188 = vld [vmem:[%s1 + $0xd0] sm:$0xff]
      %v1189 = vld [vmem:[%s1 + $0xd8] sm:$0xff]
      %v1190 = vld [vmem:[%s1 + $0xe0] sm:$0xff]
      %v1191 = vld [vmem:[%s1 + $0xe8] sm:$0xff]
      %v1192 = vld [vmem:[%s1 + $0xf0] sm:$0xff]
      %v1193 = vld [vmem:[%s1 + $0xf8] sm:$0xff]
      %v1194 = vld [vmem:[%s1 + $0x100] sm:$0xff]
      %v1195 = vld [vmem:[%s1 + $0x108] sm:$0xff]
      %v1196 = vld [vmem:[%s1 + $0x110] sm:$0xff]
      %v1197 = vld [vmem:[%s1 + $0x118] sm:$0xff]
      %v1198 = vld [vmem:[%s1 + $0x120] sm:$0xff]
      %v1199 = vld [vmem:[%s1 + $0x128] sm:$0xff]
      %v1200 = vld [vmem:[%s1 + $0x130] sm:$0xff]
      %v1201 = vld [vmem:[%s1 + $0x138] sm:$0xff]
      %v1202 = vld [vmem:[%s1 + $0x140] sm:$0x33]
      %v1244 = vunpack.c.l.b16 %v1162
      %v1245 = vunpack.c.h.b16 %v1162
      %v1246 = vunpack.c.l.b16 %v1163
      %v1247 = vunpack.c.h.b16 %v1163
      %v1248 = vunpack.c.l.b16 %v1164
      %v1249 = vunpack.c.h.b16 %v1164
      %v1250 = vunpack.c.l.b16 %v1165
      %v1251 = vunpack.c.h.b16 %v1165
      %v1252 = vunpack.c.l.b16 %v1166
      %v1253 = vunpack.c.h.b16 %v1166
      %v1254 = vunpack.c.l.b16 %v1167
      %v1255 = vunpack.c.h.b16 %v1167
      %v1256 = vunpack.c.l.b16 %v1168
      %v1257 = vunpack.c.h.b16 %v1168
      %v1258 = vunpack.c.l.b16 %v1169
      %v1259 = vunpack.c.h.b16 %v1169
      %v1260 = vunpack.c.l.b16 %v1170
      %v1261 = vunpack.c.h.b16 %v1170
      %v1262 = vunpack.c.l.b16 %v1171
      %v1263 = vunpack.c.h.b16 %v1171
      %v1264 = vunpack.c.l.b16 %v1172
      %v1265 = vunpack.c.h.b16 %v1172
      %v1266 = vunpack.c.l.b16 %v1173
      %v1267 = vunpack.c.h.b16 %v1173
      %v1268 = vunpack.c.l.b16 %v1174
      %v1269 = vunpack.c.h.b16 %v1174
      %v1270 = vunpack.c.l.b16 %v1175
      %v1271 = vunpack.c.h.b16 %v1175
      %v1272 = vunpack.c.l.b16 %v1176
      %v1273 = vunpack.c.h.b16 %v1176
      %v1274 = vunpack.c.l.b16 %v1177
      %v1275 = vunpack.c.h.b16 %v1177
      %v1276 = vunpack.c.l.b16 %v1178
      %v1277 = vunpack.c.h.b16 %v1178
      %v1278 = vunpack.c.l.b16 %v1179
      %v1279 = vunpack.c.h.b16 %v1179
      %v1280 = vunpack.c.l.b16 %v1180
      %v1281 = vunpack.c.h.b16 %v1180
      %v1282 = vunpack.c.l.b16 %v1181
      %v1283 = vunpack.c.h.b16 %v1181
      %v1284 = vunpack.c.l.b16 %v1182
      %v1285 = vunpack.c.h.b16 %v1182
      %v1286 = vunpack.c.l.b16 %v1183
      %v1287 = vunpack.c.h.b16 %v1183
      %v1288 = vunpack.c.l.b16 %v1184
      %v1289 = vunpack.c.h.b16 %v1184
      %v1290 = vunpack.c.l.b16 %v1185
      %v1291 = vunpack.c.h.b16 %v1185
      %v1292 = vunpack.c.l.b16 %v1186
      %v1293 = vunpack.c.h.b16 %v1186
      %v1294 = vunpack.c.l.b16 %v1187
      %v1295 = vunpack.c.h.b16 %v1187
      %v1296 = vunpack.c.l.b16 %v1188
      %v1297 = vunpack.c.h.b16 %v1188
      %v1298 = vunpack.c.l.b16 %v1189
      %v1299 = vunpack.c.h.b16 %v1189
      %v1300 = vunpack.c.l.b16 %v1190
      %v1301 = vunpack.c.h.b16 %v1190
      %v1302 = vunpack.c.l.b16 %v1191
      %v1303 = vunpack.c.h.b16 %v1191
      %v1304 = vunpack.c.l.b16 %v1192
      %v1305 = vunpack.c.h.b16 %v1192
      %v1306 = vunpack.c.l.b16 %v1193
      %v1307 = vunpack.c.h.b16 %v1193
      %v1308 = vunpack.c.l.b16 %v1194
      %v1309 = vunpack.c.h.b16 %v1194
      %v1310 = vunpack.c.l.b16 %v1195
      %v1311 = vunpack.c.h.b16 %v1195
      %v1312 = vunpack.c.l.b16 %v1196
      %v1313 = vunpack.c.h.b16 %v1196
      %v1314 = vunpack.c.l.b16 %v1197
      %v1315 = vunpack.c.h.b16 %v1197
      %v1316 = vunpack.c.l.b16 %v1198
      %v1317 = vunpack.c.h.b16 %v1198
      %v1318 = vunpack.c.l.b16 %v1199
      %v1319 = vunpack.c.h.b16 %v1199
      %v1320 = vunpack.c.l.b16 %v1200
      %v1321 = vunpack.c.h.b16 %v1200
      %v1322 = vunpack.c.l.b16 %v1201
      %v1323 = vunpack.c.h.b16 %v1201
      %v1324 = vunpack.c.l.b16 %v1202
      %v1325 = vunpack.c.h.b16 %v1202
      %v1326 = vpack.c.b16 %v1246, %v1244
      %v1327 = vpack.c.b16 %v1247, %v1245
      %v1328 = vpack.c.b16 %v1250, %v1248
      %v1329 = vpack.c.b16 %v1251, %v1249
      %v1330 = vpack.c.b16 %v1254, %v1252
      %v1331 = vpack.c.b16 %v1255, %v1253
      %v1332 = vpack.c.b16 %v1258, %v1256
      %v1333 = vpack.c.b16 %v1259, %v1257
      %v1334 = vpack.c.b16 %v1262, %v1260
      %v1335 = vpack.c.b16 %v1263, %v1261
      %v1336 = vpack.c.b16 %v1266, %v1264
      %v1337 = vpack.c.b16 %v1267, %v1265
      %v1338 = vpack.c.b16 %v1270, %v1268
      %v1339 = vpack.c.b16 %v1271, %v1269
      %v1340 = vpack.c.b16 %v1274, %v1272
      %v1341 = vpack.c.b16 %v1275, %v1273
      %v1342 = vpack.c.b16 %v1278, %v1276
      %v1343 = vpack.c.b16 %v1279, %v1277
      %v1344 = vpack.c.b16 %v1282, %v1280
      %v1345 = vpack.c.b16 %v1283, %v1281
      %v1346 = vpack.c.b16 %v1286, %v1284
      %v1347 = vpack.c.b16 %v1287, %v1285
      %v1348 = vpack.c.b16 %v1290, %v1288
      %v1349 = vpack.c.b16 %v1291, %v1289
      %v1350 = vpack.c.b16 %v1294, %v1292
      %v1351 = vpack.c.b16 %v1295, %v1293
      %v1352 = vpack.c.b16 %v1298, %v1296
      %v1353 = vpack.c.b16 %v1299, %v1297
      %v1354 = vpack.c.b16 %v1302, %v1300
      %v1355 = vpack.c.b16 %v1303, %v1301
      %v1356 = vpack.c.b16 %v1306, %v1304
      %v1357 = vpack.c.b16 %v1307, %v1305
      %v1358 = vpack.c.b16 %v1310, %v1308
      %v1359 = vpack.c.b16 %v1311, %v1309
      %v1360 = vpack.c.b16 %v1314, %v1312
      %v1361 = vpack.c.b16 %v1315, %v1313
      %v1362 = vpack.c.b16 %v1318, %v1316
      %v1363 = vpack.c.b16 %v1319, %v1317
      %v1364 = vpack.c.b16 %v1322, %v1320
      %v1365 = vpack.c.b16 %v1323, %v1321
      %v1366 = vpack.c.b16 %v1324, %v1324
      %v1367 = vpack.c.b16 %v1325, %v1325
      %vm1408 = vcmask 556032
      %v1410 = vsel %vm1408, %v1161, 0
      %vm1412 = vcmask 1041408
      %v1414 = vsel %vm1412, %v1366, 0
      %v1417 = vsel %vm1412, %v1367, 0
      %1419 = vmatprep.subr.bf16.mxu0 %v1341
      %1420 = vmatpush1.bf16.msra.mxu0 %v1340
      %1421 = vmatprep.subr.bf16.mxu0 %v1339
      %1422 = vmatpush1.bf16.msra.mxu0 %v1338
      %1423 = vmatprep.subr.bf16.mxu0 %v1337
      %1424 = vmatpush1.bf16.msra.mxu0 %v1336
      %1425 = vmatprep.subr.bf16.mxu0 %v1335
      %1426 = vmatpush1.bf16.msra.mxu0 %v1334
      %1427 = vmatprep.subr.bf16.mxu0 %v1333
      %1428 = vmatpush1.bf16.msra.mxu0 %v1332
      %1429 = vmatprep.subr.bf16.mxu0 %v1331
      %1430 = vmatpush1.bf16.msra.mxu0 %v1330
      %1431 = vmatprep.subr.bf16.mxu0 %v1329
      %1432 = vmatpush1.bf16.msra.mxu0 %v1328
      %1433 = vmatprep.subr.bf16.mxu0 %v1327
      %1434 = vmatpush1.bf16.msra.mxu0 %v1326
      %1435 = vmatprep.subr.bf16.mxu0 %v1357
      %1436 = vmatpush2.bf16.msra.mxu0 %v1356
      %1437 = vmatprep.subr.bf16.mxu0 %v1355
      %1438 = vmatpush2.bf16.msra.mxu0 %v1354
      %1439 = vmatprep.subr.bf16.mxu0 %v1353
      %1440 = vmatpush2.bf16.msra.mxu0 %v1352
      %1441 = vmatprep.subr.bf16.mxu0 %v1351
      %1442 = vmatpush2.bf16.msra.mxu0 %v1350
      %1443 = vmatprep.subr.bf16.mxu0 %v1349
      %1444 = vmatpush2.bf16.msra.mxu0 %v1348
      %1445 = vmatprep.subr.bf16.mxu0 %v1347
      %1446 = vmatpush2.bf16.msra.mxu0 %v1346
      %1447 = vmatprep.subr.bf16.mxu0 %v1345
      %1448 = vmatpush2.bf16.msra.mxu0 %v1344
      %1449 = vmatprep.subr.bf16.mxu0 %v1343
      %1450 = vmatpush2.bf16.msra.mxu0 %v1342
      %1451 = vmatprep.mubr.bf16.mxu0 %v1160
      %1452 = vmatmul.mubr.bf16.gmra.mxu0 %v1159
      %v1453 = vpop.f32.mrf.mxu0
      %v1454 = vadd.f32 0.0, %v1453
      %v1455 = vpop.f32.mrf.mxu0
      %v1456 = vadd.f32 0.0, %v1455
      %v1457 = vpop.f32.mrf.mxu0
      %v1458 = vadd.f32 0.0, %v1457
      %v1459 = vpop.f32.mrf.mxu0
      %v1460 = vadd.f32 0.0, %v1459
      %1461 = vdwg.mxu0
      %1462 = vmatprep.subr.bf16.mxu0 0
      %1463 = vmatpush1.bf16.msra.mxu0 0
      %1464 = vmatprep.subr.bf16.mxu0 0
      %1465 = vmatpush1.bf16.msra.mxu0 0
      %1466 = vmatprep.subr.bf16.mxu0 0
      %1467 = vmatpush1.bf16.msra.mxu0 0
      %1468 = vmatprep.subr.bf16.mxu0 %v1417
      %1469 = vmatpush1.bf16.msra.mxu0 %v1414
      %1470 = vmatprep.subr.bf16.mxu0 %v1365
      %1471 = vmatpush1.bf16.msra.mxu0 %v1364
      %1472 = vmatprep.subr.bf16.mxu0 %v1363
      %1473 = vmatpush1.bf16.msra.mxu0 %v1362
      %1474 = vmatprep.subr.bf16.mxu0 %v1361
      %1475 = vmatpush1.bf16.msra.mxu0 %v1360
      %1476 = vmatprep.subr.bf16.mxu0 %v1359
      %1477 = vmatpush1.bf16.msra.mxu0 %v1358
      %1478 = vmatprep.subr.bf16.mxu0 0
      %1479 = vmatpush2.bf16.msra.mxu0 0
      %1480 = vmatprep.subr.bf16.mxu0 0
      %1481 = vmatpush2.bf16.msra.mxu0 0
      %1482 = vmatprep.subr.bf16.mxu0 0
      %1483 = vmatpush2.bf16.msra.mxu0 0
      %1484 = vmatprep.subr.bf16.mxu0 0
      %1485 = vmatpush2.bf16.msra.mxu0 0
      %1486 = vmatprep.subr.bf16.mxu0 0
      %1487 = vmatpush2.bf16.msra.mxu0 0
      %1488 = vmatprep.subr.bf16.mxu0 0
      %1489 = vmatpush2.bf16.msra.mxu0 0
      %1490 = vmatprep.subr.bf16.mxu0 0
      %1491 = vmatpush2.bf16.msra.mxu0 0
      %1492 = vmatprep.subr.bf16.mxu0 0
      %1493 = vmatpush2.bf16.msra.mxu0 0
      %1494 = vmatprep.mubr.bf16.mxu0 0
      %1495 = vmatmul.mubr.bf16.gmra.mxu0 %v1410
      %v1496 = vpop.f32.mrf.mxu0
      %v1497 = vadd.f32 %v1454, %v1496
      %v1498 = vpop.f32.mrf.mxu0
      %v1499 = vadd.f32 %v1456, %v1498
      %v1500 = vpop.f32.mrf.mxu0
      %v1501 = vadd.f32 %v1458, %v1500
      %v1502 = vpop.f32.mrf.mxu0
      %v1503 = vadd.f32 %v1460, %v1502
      %1504 = vdwg.mxu0
      %v1505 = vpack.c.bf16 %v1501, %v1497
      %v1506 = vpack.c.bf16 %v1503, %v1499
      %v1509 = vunpack.c.l.b16 %v1505
      %v1510 = vunpack.c.l.b16 %v1506
      %v1511 = vunpack.c.h.b16 %v1505
      %v1512 = vunpack.c.h.b16 %v1506
      %v1513 = vpack.c.b16 %v1510, %v1509
      %v1514 = vpack.c.b16 %v1512, %v1511
      %vm1517 = vcmask 1043456
      %vm1518 = vcmask 31748
      %vm1519 = vmor %vm1518, %vm1517
      %1520 = vst.msk [vmem:[#allocation3] sm:$0xff] %vm1519, %v1513
      %1521 = vst.msk [vmem:[#allocation3 + $0x8] sm:$0xff] %vm1519, %v1514
      %v1522 = vld [vmem:[#allocation3] sm:$0xf]
      %v1523 = vld [vmem:[#allocation3 + $0x8] sm:$0xf]
      %v1526 = vunpack.c.l.b16 %v1522
      %v1527 = vunpack.c.l.b16 %v1523
      %v1528 = vpack.c.b16 %v1527, %v1526
      %1529 = vrot.lane.b32.xlu0 %v1528, 127
      %v1530 = vpop.permute.xlu0 %1529
      %1531 = vrot.lane.b32.xlu0 %v1528, 126
      %v1532 = vpop.permute.xlu0 %1531
      %1533 = vrot.lane.b32.xlu0 %v1528, 118
      %v1534 = vpop.permute.xlu0 %1533
      %1535 = vrot.lane.b32.xlu0 %v1528, 117
      %v1536 = vpop.permute.xlu0 %1535
      %1537 = vrot.lane.b32.xlu0 %v1528, 116
      %v1538 = vpop.permute.xlu0 %1537
      %1539 = vrot.lane.b32.xlu0 %v1528, 108
      %v1540 = vpop.permute.xlu0 %1539
      %1541 = vrot.lane.b32.xlu0 %v1528, 107
      %v1542 = vpop.permute.xlu0 %1541
      %1543 = vrot.lane.b32.xlu0 %v1528, 106
      %v1544 = vpop.permute.xlu0 %1543
      %v1545 = vld [vmem:[%s7] sm:$0xff]
      %v1546 = vld [vmem:[%s7 + $0x8] sm:$0xff]
      %v1547 = vld [vmem:[%s8] sm:$0xff]
      %v1548 = vld [vmem:[%s8 + $0x8] sm:$0xff]
      %1550 = vset.pattern.permute.xlu0 0
      %1551 = vperm.xlu0 %1550, %v1547
      %v1552 = vpop.permute.xlu0 %1551
      %1555 = vset.pattern.permute.xlu0 0
      %1556 = vperm.xlu0 %1555, %v1548
      %v1557 = vpop.permute.xlu0 %1556
      %v1561 = vunpack.c.l.b16 %v1545
      %v1562 = vunpack.c.h.b16 %v1545
      %v1563 = vunpack.c.l.b16 %v1546
      %v1564 = vunpack.c.h.b16 %v1546
      %v1565 = vpack.c.b16 %v1563, %v1561
      %v1566 = vpack.c.b16 %v1564, %v1562
      %1568 = vrot.lane.b32.xlu0 %v1528, 123
      %v1569 = vpop.permute.xlu0 %1568
      %1570 = vrot.lane.b32.xlu0 %v1530, 123
      %v1571 = vpop.permute.xlu0 %1570
      %1572 = vrot.lane.b32.xlu0 %v1532, 123
      %v1573 = vpop.permute.xlu0 %1572
      %1574 = vrot.lane.b32.xlu0 %v1534, 123
      %v1575 = vpop.permute.xlu0 %1574
      %1576 = vrot.lane.b32.xlu0 %v1536, 123
      %v1577 = vpop.permute.xlu0 %1576
      %1578 = vrot.lane.b32.xlu0 %v1538, 123
      %v1579 = vpop.permute.xlu0 %1578
      %1580 = vrot.lane.b32.xlu0 %v1540, 123
      %v1581 = vpop.permute.xlu0 %1580
      %1582 = vrot.lane.b32.xlu0 %v1542, 123
      %v1583 = vpop.permute.xlu0 %1582
      %1584 = vrot.lane.b32.xlu0 %v1544, 123
      %v1585 = vpop.permute.xlu0 %1584
      %v1596 = vsel %vm631, %v1566, 0
      %1598 = vmatprep.subr.bf16.mxu0 0
      %1599 = vmatpush1.bf16.msra.mxu0 %v1583
      %1600 = vmatprep.subr.bf16.mxu0 0
      %1601 = vmatpush1.bf16.msra.mxu0 %v1581
      %1602 = vmatprep.subr.bf16.mxu0 0
      %1603 = vmatpush1.bf16.msra.mxu0 %v1579
      %1604 = vmatprep.subr.bf16.mxu0 0
      %1605 = vmatpush1.bf16.msra.mxu0 %v1577
      %1606 = vmatprep.subr.bf16.mxu0 0
      %1607 = vmatpush1.bf16.msra.mxu0 %v1575
      %1608 = vmatprep.subr.bf16.mxu0 0
      %1609 = vmatpush1.bf16.msra.mxu0 %v1573
      %1610 = vmatprep.subr.bf16.mxu0 0
      %1611 = vmatpush1.bf16.msra.mxu0 %v1571
      %1612 = vmatprep.subr.bf16.mxu0 0
      %1613 = vmatpush1.bf16.msra.mxu0 %v1569
      %1614 = vmatprep.subr.bf16.mxu0 0
      %1615 = vmatpush2.bf16.msra.mxu0 0
      %1616 = vmatprep.subr.bf16.mxu0 0
      %1617 = vmatpush2.bf16.msra.mxu0 0
      %1618 = vmatprep.subr.bf16.mxu0 0
      %1619 = vmatpush2.bf16.msra.mxu0 0
      %1620 = vmatprep.subr.bf16.mxu0 0
      %1621 = vmatpush2.bf16.msra.mxu0 0
      %1622 = vmatprep.subr.bf16.mxu0 0
      %1623 = vmatpush2.bf16.msra.mxu0 0
      %1624 = vmatprep.subr.bf16.mxu0 0
      %1625 = vmatpush2.bf16.msra.mxu0 0
      %1626 = vmatprep.subr.bf16.mxu0 0
      %1627 = vmatpush2.bf16.msra.mxu0 0
      %1628 = vmatprep.subr.bf16.mxu0 0
      %1629 = vmatpush2.bf16.msra.mxu0 %v1585
      %1630 = vmatprep.mubr.bf16.mxu0 %v1596
      %1631 = vmatmul.mubr.bf16.gmra.mxu0 %v1565
      %v1632 = vpop.f32.mrf.mxu0
      %v1633 = vadd.f32 %v1552, %v1632
      %v1634 = vpop.f32.mrf.mxu0
      %v1635 = vpop.f32.mrf.mxu0
      %v1636 = vadd.f32 %v1557, %v1635
      %v1637 = vpop.f32.mrf.mxu0
      %1638 = vdwg.mxu0
      %v1639 = vxor.u32 %v1633, 2147483648
      %v1640 = vxor.u32 %v1636, 2147483648
      %v1641 = vmul.f32 %v1639, 1.442695
      %v1642 = vpow.pop %v1641
      %v1643 = vmul.f32 %v1640, 1.442695
      %v1644 = vpow.pop %v1643
      %v1645 = vadd.f32 %v1642, 1.0
      %v1646 = vadd.f32 %v1644, 1.0
      %v1647 = vrcp.pop %v1645
      %v1648 = vmul.f32 1.0, %v1647
      %v1649 = vrcp.pop %v1646
      %v1650 = vmul.f32 1.0, %v1649
      %v1651 = vmul.f32 %v1633, %v1648
      %v1652 = vmul.f32 %v1636, %v1650
      %v1653 = vld [vmem:[%s9] sm:$0xf]
      %v1654 = vpack.c.bf16 %v1652, %v1651
      %v1655 = vld [vmem:[%s10] sm:$0xf]
      %1656 = vrot.lane.b32.xlu0 %v1528, 112
      %v1657 = vpop.permute.xlu0 %1656
      %v1660 = vsel %vm631, %v1655, 0
      %1662 = vmatprep.subr.bf16.mxu0 0
      %1663 = vmatpush1.bf16.msra.mxu0 0
      %1664 = vmatprep.subr.bf16.mxu0 0
      %1665 = vmatpush1.bf16.msra.mxu0 0
      %1666 = vmatprep.subr.bf16.mxu0 0
      %1667 = vmatpush1.bf16.msra.mxu0 0
      %1668 = vmatprep.subr.bf16.mxu0 0
      %1669 = vmatpush1.bf16.msra.mxu0 0
      %1670 = vmatprep.subr.bf16.mxu0 0
      %1671 = vmatpush1.bf16.msra.mxu0 0
      %1672 = vmatprep.subr.bf16.mxu0 0
      %1673 = vmatpush1.bf16.msra.mxu0 0
      %1674 = vmatprep.subr.bf16.mxu0 0
      %1675 = vmatpush1.bf16.msra.mxu0 0
      %1676 = vmatprep.subr.bf16.mxu0 0
      %1677 = vmatpush1.bf16.msra.mxu0 %v1657
      %1678 = vmatprep.subr.bf16.mxu0 0
      %1679 = vmatpush2.bf16.msra.mxu0 0
      %1680 = vmatprep.subr.bf16.mxu0 0
      %1681 = vmatpush2.bf16.msra.mxu0 0
      %1682 = vmatprep.subr.bf16.mxu0 0
      %1683 = vmatpush2.bf16.msra.mxu0 0
      %1684 = vmatprep.subr.bf16.mxu0 0
      %1685 = vmatpush2.bf16.msra.mxu0 0
      %1686 = vmatprep.subr.bf16.mxu0 0
      %1687 = vmatpush2.bf16.msra.mxu0 0
      %1688 = vmatprep.subr.bf16.mxu0 0
      %1689 = vmatpush2.bf16.msra.mxu0 0
      %1690 = vmatprep.subr.bf16.mxu0 0
      %1691 = vmatpush2.bf16.msra.mxu0 0
      %1692 = vmatprep.subr.bf16.mxu0 0
      %1693 = vmatpush2.bf16.msra.mxu0 0
      %1694 = vmatprep.mubr.bf16.mxu0 0
      %1695 = vmatmul.mubr.bf16.gmra.mxu0 %v1660
      %v1696 = vpop.f32.mrf.mxu0
      %v1697 = vadd.f32 0.0, %v1696
      %v1698 = vpop.f32.mrf.mxu0
      %v1699 = vpop.f32.mrf.mxu0
      %v1700 = vpop.f32.mrf.mxu0
      %1701 = vdwg.mxu0
      %v1703 = vsel %vm631, %v1653, 0
      %1705 = vmatprep.subr.bf16.mxu0 0
      %1706 = vmatpush1.bf16.msra.mxu0 0
      %1707 = vmatprep.subr.bf16.mxu0 0
      %1708 = vmatpush1.bf16.msra.mxu0 0
      %1709 = vmatprep.subr.bf16.mxu0 0
      %1710 = vmatpush1.bf16.msra.mxu0 0
      %1711 = vmatprep.subr.bf16.mxu0 0
      %1712 = vmatpush1.bf16.msra.mxu0 0
      %1713 = vmatprep.subr.bf16.mxu0 0
      %1714 = vmatpush1.bf16.msra.mxu0 0
      %1715 = vmatprep.subr.bf16.mxu0 0
      %1716 = vmatpush1.bf16.msra.mxu0 0
      %1717 = vmatprep.subr.bf16.mxu0 0
      %1718 = vmatpush1.bf16.msra.mxu0 0
      %1719 = vmatprep.subr.bf16.mxu0 0
      %1720 = vmatpush1.bf16.msra.mxu0 %v1654
      %1721 = vmatprep.subr.bf16.mxu0 0
      %1722 = vmatpush2.bf16.msra.mxu0 0
      %1723 = vmatprep.subr.bf16.mxu0 0
      %1724 = vmatpush2.bf16.msra.mxu0 0
      %1725 = vmatprep.subr.bf16.mxu0 0
      %1726 = vmatpush2.bf16.msra.mxu0 0
      %1727 = vmatprep.subr.bf16.mxu0 0
      %1728 = vmatpush2.bf16.msra.mxu0 0
      %1729 = vmatprep.subr.bf16.mxu0 0
      %1730 = vmatpush2.bf16.msra.mxu0 0
      %1731 = vmatprep.subr.bf16.mxu0 0
      %1732 = vmatpush2.bf16.msra.mxu0 0
      %1733 = vmatprep.subr.bf16.mxu0 0
      %1734 = vmatpush2.bf16.msra.mxu0 0
      %1735 = vmatprep.subr.bf16.mxu0 0
      %1736 = vmatpush2.bf16.msra.mxu0 0
      %1737 = vmatprep.mubr.bf16.mxu0 0
      %1738 = vmatmul.mubr.bf16.gmra.mxu0 %v1703
      %v1739 = vpop.f32.mrf.mxu0
      %v1740 = vadd.f32 %v1697, %v1739
      %v1741 = vpop.f32.mrf.mxu0
      %v1742 = vpop.f32.mrf.mxu0
      %v1743 = vpop.f32.mrf.mxu0
      %1744 = vdwg.mxu0
      %v1745 = vld [vmem:[%s11] sm:$0xff]
      %1747 = vset.pattern.permute.xlu0 0
      %1748 = vperm.xlu0 %1747, %v1745
      %v1749 = vpop.permute.xlu0 %1748
      %v1751 = vadd.f32 %v1740, %v1749
      %v1752 = vxor.u32 %v1751, 2147483648
      %v1753 = vmul.f32 %v1752, 1.442695
      %v1754 = vpow.pop %v1753
      %v1755 = vadd.f32 %v1754, 1.0
      %v1756 = vrcp.pop %v1755
      %v1757 = vmul.f32 1.0, %v1756
      %v1758 = vmul.f32 %v1751, %v1757
      %vm1759 = vcmask 818176
      %1760 = vst.msk [vmem:[%s411] sm:$0xff] %vm1759, %v1758
      %vm1761 = vcmask 1048352
      %1762 = vst.msk [vmem:[%s411] sm:$0xff] %vm1761, 0.0
      %p1763 = scmp.lt.s32.totalorder %s23, 1
      %s1764 = scalar_select %p1763, %s23, 1
      %s1765 = smul.addr %s1764, 8
      %s1766 = scalar_lea.vmem %s12, %s1765
      // Predicated region
      $region69: #{_fused_forward.1} parent=67 // pred_check
        %p1767 = pneg %p298
      $region70: #{_fused_forward.1} parent=67 // pred_check_branch
        %1769 = sbr.rel (%p1767) target = $region72
      $region71: #{_fused_forward.1} parent=67 // pred_region
        _
      $region72: #{_fused_forward.1} parent=67 // pred_fallthru
        _
    $region68: #{_fused_forward.1} parent=5 // pred_fallthru
      _
    %p1770 = scmp.le.s32.totalorder 2, %s18
    // Predicated region
    $region73: #{_fused_forward.1} parent=5 // pred_check
      %p1771 = pneg %p1770
    $region74: #{_fused_forward.1} parent=5 // pred_check_branch
      %1773 = sbr.rel (%p1771) target = $region76
    $region75: #{_fused_forward.1} parent=5 // pred_region
      %s1774 = ssub.s32 %s18, 2
      // Predicated region
      $region77: #{_fused_forward.1} parent=75 // pred_check
        %p1775 = pneg %p304
      $region78: #{_fused_forward.1} parent=75 // pred_check_branch
        %1777 = sbr.rel (%p1775) target = $region80
      $region79: #{_fused_forward.1} parent=75 // pred_region
        %p1778 = scmp.lt.s32.totalorder %s24, 1
        %s1779 = scalar_select %p1778, %s24, 1
        %s1780 = smul.addr %s1779, 8
        %s1781 = scalar_lea.vmem %s12, %s1780
      $region80: #{_fused_forward.1} parent=75 // pred_fallthru
        _
    $region76: #{_fused_forward.1} parent=5 // pred_fallthru
      _
  $region6: #{_fused_forward.1} parent=0 // loop_footer
    %s22 = sadd.s32 1, %s18
  $region7: #{_fused_forward.1} parent=0 // loop_footer_branch
    %17 = sbr.rel target = $region3
  $region8: #{_fused_forward.1} parent=0 // loop_exit
    _

</llo_original>
